<compile_context>
chip_gen: v7x
topology: tpu7x:2x2x1
jax: 0.10.0
libtpu: 0.0.40
codegen_flags: <defaults>
</compile_context>

<pallas_src>
from functools import partial

import jax
import jax.numpy as jnp
import numpy as np
from jax.experimental import pallas as pl
from jax.experimental.pallas import tpu as pltpu


def _rvq_kernel(x_ref, cb_ref, cbt_ref, e2_ref, out_ref, ind_ref, loss_ref,
                *, num_quantizers, loss_scale, valid_rows, tile_rows,
                mask_rows, use_bf16_distance):
    x = x_ref[...].astype(jnp.float32)                       # (TB, Dp)
    residual = x
    tb = tile_rows
    c = cbt_ref.shape[2]

    if mask_rows:
        # Only the last tile can contain padded rows; mask them out of the loss.
        row_ids = (pl.program_id(0) * tb
                   + jax.lax.broadcasted_iota(jnp.int32, (tb, 1), 0))
        row_mask = (row_ids < valid_rows).astype(jnp.float32)  # (TB, 1)

    idx_rows = []
    loss_cols = []
    for q in range(num_quantizers):          # Q small & static: fully unrolled
        cbt = cbt_ref[q].astype(jnp.float32)  # (Dp, C) distance operand (pre-transposed)
        cb = cb_ref[q].astype(jnp.float32)    # (C, Dp) gather operand
        e2 = e2_ref[q]                        # (1, C)  precomputed ||e||^2

        # Distance up to a per-row constant: ||e||^2 - 2 r.e (argmin-invariant).
        if use_bf16_distance:
            dots = jnp.dot(residual.astype(jnp.bfloat16),
                           cbt.astype(jnp.bfloat16),
                           preferred_element_type=jnp.float32)
        else:
            dots = jnp.dot(residual, cbt, preferred_element_type=jnp.float32)
        dist = e2 - 2.0 * dots                                 # (TB, C)

        idx = jnp.argmin(dist, axis=-1).astype(jnp.int32)      # (TB,)

        # Codebook gather as a one-hot matmul (MXU-friendly, exact for f32).
        onehot = (idx[:, None] ==
                  jax.lax.broadcasted_iota(jnp.int32, (1, c), 1)).astype(jnp.float32)
        quantized = jnp.dot(onehot, cb,
                            preferred_element_type=jnp.float32)  # (TB, Dp)

        residual = residual - quantized

        # Commitment loss partial sum: mse(quantized, r_in) == mean(new_residual^2).
        sq = residual * residual
        if mask_rows:
            sq = sq * row_mask
        loss_cols.append(jnp.sum(sq, keepdims=True))           # (1, 1)
        idx_rows.append(idx.reshape(1, tb))                    # (1, TB)

    # Single dense store per tile for each output.
    out_ref[...] = (x - residual).astype(out_ref.dtype)        # == sum of quantized
    ind_ref[...] = jnp.concatenate(idx_rows, axis=0)           # (Q, TB)
    loss_row = jnp.concatenate(loss_cols, axis=1) * loss_scale  # (1, Q)
    sub = jax.lax.broadcasted_iota(jnp.int32, (8, num_quantizers), 0)
    loss_ref[...] = jnp.where(sub == 0, loss_row, 0.0)          # row 0 carries data


def _choose_tiling(bn, max_tile=512):
    """Return (tile_rows, padded_rows) for the token axis.

    bn <= max_tile: one tile equal to the full axis (block dims == array dims).
    bn  > max_tile: 128-multiple tiles; bn padded up to a tile multiple (padded
    rows are masked out of the loss in-kernel).  Prefers an even tile count so
    v7x's two TensorCores both get work.
    """
    if bn <= max_tile:
        return bn, bn
    tb = max(128, (max_tile // 128) * 128)
    bn_pad = -(-bn // tb) * tb
    if (bn_pad // tb) % 2 == 1 and tb >= 256:
        tb_half = tb // 2
        bn_pad_half = -(-bn // tb_half) * tb_half
        if (bn_pad_half // tb_half) % 2 == 0:
            return tb_half, bn_pad_half
    return tb, bn_pad


def _vmem_limit_bytes(tb, dp, c, q):
    f32 = 4
    resident = 2 * (2 * q * c * dp + q * c) * f32          # cb + cbT + e2 (buffered)
    streamed = 2 * (2 * tb * dp + q * tb + 8 * q) * f32    # x/out/ind/loss blocks
    temps = (2 * tb * c + 4 * tb * dp) * f32               # dist/onehot/residual/spill
    need = resident + streamed + temps + (2 << 20)
    # Clamp to the v7x physical VMEM budget (64 MiB); never below the 32 MiB default.
    return int(min(max(need, 32 << 20), 64 << 20))


def residual_vq_forward(x, codebooks, *, commitment_weight=1.0, max_tile=512,
                        use_bf16_distance=False):
    """x: (B, N, D) float32; codebooks: (Q, C, D) float32."""
    B, N, D = x.shape
    Q, C, D2 = codebooks.shape
    assert D == D2
    BN = B * N

    Dp = D if D % 128 == 0 else (-(-D // 128) * 128)        # pad D to MXU lane width
    TB, BN_pad = _choose_tiling(BN, max_tile)
    num_tiles = BN_pad // TB
    mask_rows = BN_pad != BN

    x_flat = x.reshape(BN, D).astype(jnp.float32)
    cb = codebooks.astype(jnp.float32)
    # ||e||^2 precomputed once per codebook (zero padding below does not change it).
    e2 = jnp.sum(cb * cb, axis=-1).reshape(Q, 1, C)

    if Dp != D:
        x_flat = jnp.pad(x_flat, ((0, 0), (0, Dp - D)))
        cb = jnp.pad(cb, ((0, 0), (0, 0), (0, Dp - D)))
    if mask_rows:
        x_flat = jnp.pad(x_flat, ((0, BN_pad - BN), (0, 0)))
    cbT = jnp.transpose(cb, (0, 2, 1))                       # (Q, Dp, C)

    kernel = partial(
        _rvq_kernel,
        num_quantizers=Q,
        loss_scale=float(commitment_weight) / float(BN * D),
        valid_rows=BN,
        tile_rows=TB,
        mask_rows=mask_rows,
        use_bf16_distance=use_bf16_distance)

    out, ind, loss = pl.pallas_call(
        kernel,
        out_shape=(
            jax.ShapeDtypeStruct((BN_pad, Dp), jnp.float32),     # quantized_out (flat)
            jax.ShapeDtypeStruct((Q, BN_pad), jnp.int32),        # indices (lane-dense)
            jax.ShapeDtypeStruct((num_tiles * 8, Q), jnp.float32),  # loss partials
        ),
        grid=(num_tiles,),
        in_specs=[
            pl.BlockSpec((TB, Dp), lambda i: (i, 0)),            # x tile (pipelined)
            pl.BlockSpec((Q, C, Dp), lambda i: (0, 0, 0)),       # codebooks (resident)
            pl.BlockSpec((Q, Dp, C), lambda i: (0, 0, 0)),       # codebooks^T (resident)
            pl.BlockSpec((Q, 1, C), lambda i: (0, 0, 0)),        # ||e||^2 (resident)
        ],
        out_specs=[
            pl.BlockSpec((TB, Dp), lambda i: (i, 0)),            # quantized_out tile
            pl.BlockSpec((Q, TB), lambda i: (0, i)),             # dense index block
            pl.BlockSpec((8, Q), lambda i: (i, 0)),              # per-tile loss row
        ],
        compiler_params=pltpu.CompilerParams(
            dimension_semantics=("parallel",),
            vmem_limit_bytes=_vmem_limit_bytes(TB, Dp, C, Q)),
    )(x_flat, cb, cbT, e2)

    quantized_out = out[:BN, :D].reshape(B, N, D)
    all_indices = ind[:, :BN].reshape(Q, B, N).transpose(1, 2, 0)  # (B, N, Q)
    all_losses = jnp.sum(loss, axis=0)                              # (Q,)
    return quantized_out, all_indices, all_losses


def _reference_residual_vq(x, codebooks, commitment_weight=1.0):
    B, N, D = x.shape
    Q = codebooks.shape[0]
    r = x.reshape(B * N, D).astype(jnp.float32)
    qout = jnp.zeros_like(r)
    inds, losses = [], []
    for q in range(Q):
        cb = codebooks[q].astype(jnp.float32)
        dist = (jnp.sum(r * r, -1, keepdims=True)
                - 2.0 * r @ cb.T
                + jnp.sum(cb * cb, -1)[None, :])
        idx = jnp.argmin(dist, axis=-1).astype(jnp.int32)
        quant = cb[idx]
        losses.append(commitment_weight * jnp.mean((quant - r) ** 2))
        r = r - quant
        qout = qout + quant
        inds.append(idx.reshape(B, N))
    return (qout.reshape(B, N, D),
            jnp.stack(inds, axis=-1),
            jnp.stack(losses, axis=-1))


if __name__ == "__main__":
    # num_quantizers=4, dim=64, codebook_size=256; input (batch=2, seq=32, dim=64)
    B, N, D = 2, 32, 64
    Q, C = 4, 256
    commitment_weight = 1.0

    key = jax.random.PRNGKey(0)
    kx, kc = jax.random.split(key)
    x = jax.random.normal(kx, (B, N, D), dtype=jnp.float32)
    codebooks = jax.random.normal(kc, (Q, C, D), dtype=jnp.float32)

    quantized_out, all_indices, all_losses = residual_vq_forward(
        x, codebooks, commitment_weight=commitment_weight)
    jax.block_until_ready((quantized_out, all_indices, all_losses))

    ref_q, ref_i, ref_l = _reference_residual_vq(x, codebooks, commitment_weight)
    assert quantized_out.shape == (B, N, D)
    assert all_indices.shape == (B, N, Q) and all_indices.dtype == jnp.int32
    assert all_losses.shape == (Q,)
    np.testing.assert_allclose(np.asarray(quantized_out), np.asarray(ref_q),
                               rtol=1e-4, atol=1e-4)
    np.testing.assert_allclose(np.asarray(all_losses), np.asarray(ref_l),
                               rtol=1e-4, atol=1e-5)
    np.testing.assert_array_equal(np.asarray(all_indices), np.asarray(ref_i))

    print("KERNEL_OK")
</pallas_src>

<mosaic_0001>
module attributes {stable_mosaic.version = 11 : i64} {
  func.func @_rvq_kernel(%arg0: i32, %arg1: memref<64x128xf32, #tpu.memory_space<vmem>>, %arg2: memref<4x256x128xf32, #tpu.memory_space<vmem>>, %arg3: memref<4x128x256xf32, #tpu.memory_space<vmem>>, %arg4: memref<4x1x256xf32, #tpu.memory_space<vmem>>, %arg5: memref<64x128xf32, #tpu.memory_space<vmem>>, %arg6: memref<4x64xi32, #tpu.memory_space<vmem>>, %arg7: memref<8x4xf32, #tpu.memory_space<vmem>>) attributes {dimension_semantics = [#tpu.dimension_semantics<parallel>], iteration_bounds = array<i64: 1>, scalar_prefetch = 0 : i64, scratch_operands = 0 : i64, tpu.core_type = #tpu.core_type<tc>, window_params = [{transform_indices = @transform_0, window_bounds = array<i64: 64, 128>}, {pipeline_mode = #tpu.pipeline_mode<synchronous>, transform_indices = @transform_1, window_bounds = array<i64: 4, 256, 128>}, {pipeline_mode = #tpu.pipeline_mode<synchronous>, transform_indices = @transform_2, window_bounds = array<i64: 4, 128, 256>}, {pipeline_mode = #tpu.pipeline_mode<synchronous>, transform_indices = @transform_3, window_bounds = array<i64: 4, 1, 256>}, {transform_indices = @transform_4, window_bounds = array<i64: 64, 128>}, {transform_indices = @transform_5, window_bounds = array<i64: 4, 64>}, {transform_indices = @transform_6, window_bounds = array<i64: 8, 4>}]} {
    %c0 = arith.constant 0 : index
    %c0_0 = arith.constant 0 : index
    %0 = vector.load %arg1[%c0, %c0_0] : memref<64x128xf32, #tpu.memory_space<vmem>>, vector<64x128xf32>
    %c0_1 = arith.constant 0 : index
    %c0_2 = arith.constant 0 : index
    %c0_3 = arith.constant 0 : index
    %1 = vector.load %arg3[%c0_1, %c0_2, %c0_3] : memref<4x128x256xf32, #tpu.memory_space<vmem>>, vector<1x128x256xf32>
    %2 = vector.shape_cast %1 : vector<1x128x256xf32> to vector<128x256xf32>
    %c0_4 = arith.constant 0 : index
    %c0_5 = arith.constant 0 : index
    %c0_6 = arith.constant 0 : index
    %3 = vector.load %arg2[%c0_4, %c0_5, %c0_6] : memref<4x256x128xf32, #tpu.memory_space<vmem>>, vector<1x256x128xf32>
    %4 = vector.shape_cast %3 : vector<1x256x128xf32> to vector<256x128xf32>
    %c0_7 = arith.constant 0 : index
    %c0_8 = arith.constant 0 : index
    %c0_9 = arith.constant 0 : index
    %5 = vector.load %arg4[%c0_7, %c0_8, %c0_9] : memref<4x1x256xf32, #tpu.memory_space<vmem>>, vector<1x1x256xf32>
    %6 = vector.shape_cast %5 : vector<1x1x256xf32> to vector<1x256xf32>
    %cst = arith.constant dense<0.000000e+00> : vector<64x256xf32>
    %7 = tpu.matmul %0, %2, %cst {dimension_numbers = #tpu.dot_dimension_numbers<[1], [0], [0], [1], [0, 0, 1, 1], [], []>} : vector<64x128xf32>, vector<128x256xf32>, vector<64x256xf32> -> vector<64x256xf32>
    %cst_10 = arith.constant 2.000000e+00 : f32
    %8 = vector.broadcast %cst_10 : f32 to vector<64x256xf32>
    %9 = arith.mulf %8, %7 : vector<64x256xf32>
    %10 = vector.broadcast %6 : vector<1x256xf32> to vector<64x256xf32>
    %11 = arith.subf %10, %9 : vector<64x256xf32>
    %12 = tpu.reduce_index %11 {axis = 1 : i32, kind = #tpu.reduction_kind<arg_min>} : vector<64x256xf32> -> vector<64xi32>
    %13 = vector.shape_cast %12 : vector<64xi32> to vector<64x1xi32>
    %14 = tpu.iota {dimensions = array<i32: 1>} : vector<1x256xi32>
    %15 = vector.broadcast %13 : vector<64x1xi32> to vector<64x256xi32>
    %16 = vector.broadcast %14 : vector<1x256xi32> to vector<64x256xi32>
    %17 = arith.cmpi eq, %15, %16 : vector<64x256xi32>
    %18 = arith.extui %17 : vector<64x256xi1> to vector<64x256xi32>
    %19 = arith.sitofp %18 : vector<64x256xi32> to vector<64x256xf32>
    %cst_11 = arith.constant dense<0.000000e+00> : vector<64x128xf32>
    %20 = tpu.matmul %19, %4, %cst_11 {dimension_numbers = #tpu.dot_dimension_numbers<[1], [0], [0], [1], [0, 0, 1, 1], [], []>} : vector<64x256xf32>, vector<256x128xf32>, vector<64x128xf32> -> vector<64x128xf32>
    %21 = arith.subf %0, %20 : vector<64x128xf32>
    %22 = arith.mulf %21, %21 : vector<64x128xf32>
    %23 = vector.shape_cast %22 : vector<64x128xf32> to vector<1x64x128xf32>
    %cst_12 = arith.constant dense<0.000000e+00> : vector<1xf32>
    %24 = vector.multi_reduction <add>, %23, %cst_12 [1, 2] : vector<1x64x128xf32> to vector<1xf32>
    %25 = vector.shape_cast %24 : vector<1xf32> to vector<1x1x1xf32>
    %26 = vector.extract %25[0, 0, 0] : f32 from vector<1x1x1xf32>
    %27 = vector.broadcast %26 : f32 to vector<1x1xf32>
    %28 = vector.shape_cast %12 : vector<64xi32> to vector<1x64xi32>
    %c1 = arith.constant 1 : index
    %c0_13 = arith.constant 0 : index
    %c0_14 = arith.constant 0 : index
    %29 = vector.load %arg3[%c1, %c0_13, %c0_14] : memref<4x128x256xf32, #tpu.memory_space<vmem>>, vector<1x128x256xf32>
    %30 = vector.shape_cast %29 : vector<1x128x256xf32> to vector<128x256xf32>
    %c1_15 = arith.constant 1 : index
    %c0_16 = arith.constant 0 : index
    %c0_17 = arith.constant 0 : index
    %31 = vector.load %arg2[%c1_15, %c0_16, %c0_17] : memref<4x256x128xf32, #tpu.memory_space<vmem>>, vector<1x256x128xf32>
    %32 = vector.shape_cast %31 : vector<1x256x128xf32> to vector<256x128xf32>
    %c1_18 = arith.constant 1 : index
    %c0_19 = arith.constant 0 : index
    %c0_20 = arith.constant 0 : index
    %33 = vector.load %arg4[%c1_18, %c0_19, %c0_20] : memref<4x1x256xf32, #tpu.memory_space<vmem>>, vector<1x1x256xf32>
    %34 = vector.shape_cast %33 : vector<1x1x256xf32> to vector<1x256xf32>
    %cst_21 = arith.constant dense<0.000000e+00> : vector<64x256xf32>
    %35 = tpu.matmul %21, %30, %cst_21 {dimension_numbers = #tpu.dot_dimension_numbers<[1], [0], [0], [1], [0, 0, 1, 1], [], []>} : vector<64x128xf32>, vector<128x256xf32>, vector<64x256xf32> -> vector<64x256xf32>
    %cst_22 = arith.constant 2.000000e+00 : f32
    %36 = vector.broadcast %cst_22 : f32 to vector<64x256xf32>
    %37 = arith.mulf %36, %35 : vector<64x256xf32>
    %38 = vector.broadcast %34 : vector<1x256xf32> to vector<64x256xf32>
    %39 = arith.subf %38, %37 : vector<64x256xf32>
    %40 = tpu.reduce_index %39 {axis = 1 : i32, kind = #tpu.reduction_kind<arg_min>} : vector<64x256xf32> -> vector<64xi32>
    %41 = vector.shape_cast %40 : vector<64xi32> to vector<64x1xi32>
    %42 = tpu.iota {dimensions = array<i32: 1>} : vector<1x256xi32>
    %43 = vector.broadcast %41 : vector<64x1xi32> to vector<64x256xi32>
    %44 = vector.broadcast %42 : vector<1x256xi32> to vector<64x256xi32>
    %45 = arith.cmpi eq, %43, %44 : vector<64x256xi32>
    %46 = arith.extui %45 : vector<64x256xi1> to vector<64x256xi32>
    %47 = arith.sitofp %46 : vector<64x256xi32> to vector<64x256xf32>
    %cst_23 = arith.constant dense<0.000000e+00> : vector<64x128xf32>
    %48 = tpu.matmul %47, %32, %cst_23 {dimension_numbers = #tpu.dot_dimension_numbers<[1], [0], [0], [1], [0, 0, 1, 1], [], []>} : vector<64x256xf32>, vector<256x128xf32>, vector<64x128xf32> -> vector<64x128xf32>
    %49 = arith.subf %21, %48 : vector<64x128xf32>
    %50 = arith.mulf %49, %49 : vector<64x128xf32>
    %51 = vector.shape_cast %50 : vector<64x128xf32> to vector<1x64x128xf32>
    %cst_24 = arith.constant dense<0.000000e+00> : vector<1xf32>
    %52 = vector.multi_reduction <add>, %51, %cst_24 [1, 2] : vector<1x64x128xf32> to vector<1xf32>
    %53 = vector.shape_cast %52 : vector<1xf32> to vector<1x1x1xf32>
    %54 = vector.extract %53[0, 0, 0] : f32 from vector<1x1x1xf32>
    %55 = vector.broadcast %54 : f32 to vector<1x1xf32>
    %56 = vector.shape_cast %40 : vector<64xi32> to vector<1x64xi32>
    %c2 = arith.constant 2 : index
    %c0_25 = arith.constant 0 : index
    %c0_26 = arith.constant 0 : index
    %57 = vector.load %arg3[%c2, %c0_25, %c0_26] : memref<4x128x256xf32, #tpu.memory_space<vmem>>, vector<1x128x256xf32>
    %58 = vector.shape_cast %57 : vector<1x128x256xf32> to vector<128x256xf32>
    %c2_27 = arith.constant 2 : index
    %c0_28 = arith.constant 0 : index
    %c0_29 = arith.constant 0 : index
    %59 = vector.load %arg2[%c2_27, %c0_28, %c0_29] : memref<4x256x128xf32, #tpu.memory_space<vmem>>, vector<1x256x128xf32>
    %60 = vector.shape_cast %59 : vector<1x256x128xf32> to vector<256x128xf32>
    %c2_30 = arith.constant 2 : index
    %c0_31 = arith.constant 0 : index
    %c0_32 = arith.constant 0 : index
    %61 = vector.load %arg4[%c2_30, %c0_31, %c0_32] : memref<4x1x256xf32, #tpu.memory_space<vmem>>, vector<1x1x256xf32>
    %62 = vector.shape_cast %61 : vector<1x1x256xf32> to vector<1x256xf32>
    %cst_33 = arith.constant dense<0.000000e+00> : vector<64x256xf32>
    %63 = tpu.matmul %49, %58, %cst_33 {dimension_numbers = #tpu.dot_dimension_numbers<[1], [0], [0], [1], [0, 0, 1, 1], [], []>} : vector<64x128xf32>, vector<128x256xf32>, vector<64x256xf32> -> vector<64x256xf32>
    %cst_34 = arith.constant 2.000000e+00 : f32
    %64 = vector.broadcast %cst_34 : f32 to vector<64x256xf32>
    %65 = arith.mulf %64, %63 : vector<64x256xf32>
    %66 = vector.broadcast %62 : vector<1x256xf32> to vector<64x256xf32>
    %67 = arith.subf %66, %65 : vector<64x256xf32>
    %68 = tpu.reduce_index %67 {axis = 1 : i32, kind = #tpu.reduction_kind<arg_min>} : vector<64x256xf32> -> vector<64xi32>
    %69 = vector.shape_cast %68 : vector<64xi32> to vector<64x1xi32>
    %70 = tpu.iota {dimensions = array<i32: 1>} : vector<1x256xi32>
    %71 = vector.broadcast %69 : vector<64x1xi32> to vector<64x256xi32>
    %72 = vector.broadcast %70 : vector<1x256xi32> to vector<64x256xi32>
    %73 = arith.cmpi eq, %71, %72 : vector<64x256xi32>
    %74 = arith.extui %73 : vector<64x256xi1> to vector<64x256xi32>
    %75 = arith.sitofp %74 : vector<64x256xi32> to vector<64x256xf32>
    %cst_35 = arith.constant dense<0.000000e+00> : vector<64x128xf32>
    %76 = tpu.matmul %75, %60, %cst_35 {dimension_numbers = #tpu.dot_dimension_numbers<[1], [0], [0], [1], [0, 0, 1, 1], [], []>} : vector<64x256xf32>, vector<256x128xf32>, vector<64x128xf32> -> vector<64x128xf32>
    %77 = arith.subf %49, %76 : vector<64x128xf32>
    %78 = arith.mulf %77, %77 : vector<64x128xf32>
    %79 = vector.shape_cast %78 : vector<64x128xf32> to vector<1x64x128xf32>
    %cst_36 = arith.constant dense<0.000000e+00> : vector<1xf32>
    %80 = vector.multi_reduction <add>, %79, %cst_36 [1, 2] : vector<1x64x128xf32> to vector<1xf32>
    %81 = vector.shape_cast %80 : vector<1xf32> to vector<1x1x1xf32>
    %82 = vector.extract %81[0, 0, 0] : f32 from vector<1x1x1xf32>
    %83 = vector.broadcast %82 : f32 to vector<1x1xf32>
    %84 = vector.shape_cast %68 : vector<64xi32> to vector<1x64xi32>
    %c3 = arith.constant 3 : index
    %c0_37 = arith.constant 0 : index
    %c0_38 = arith.constant 0 : index
    %85 = vector.load %arg3[%c3, %c0_37, %c0_38] : memref<4x128x256xf32, #tpu.memory_space<vmem>>, vector<1x128x256xf32>
    %86 = vector.shape_cast %85 : vector<1x128x256xf32> to vector<128x256xf32>
    %c3_39 = arith.constant 3 : index
    %c0_40 = arith.constant 0 : index
    %c0_41 = arith.constant 0 : index
    %87 = vector.load %arg2[%c3_39, %c0_40, %c0_41] : memref<4x256x128xf32, #tpu.memory_space<vmem>>, vector<1x256x128xf32>
    %88 = vector.shape_cast %87 : vector<1x256x128xf32> to vector<256x128xf32>
    %c3_42 = arith.constant 3 : index
    %c0_43 = arith.constant 0 : index
    %c0_44 = arith.constant 0 : index
    %89 = vector.load %arg4[%c3_42, %c0_43, %c0_44] : memref<4x1x256xf32, #tpu.memory_space<vmem>>, vector<1x1x256xf32>
    %90 = vector.shape_cast %89 : vector<1x1x256xf32> to vector<1x256xf32>
    %cst_45 = arith.constant dense<0.000000e+00> : vector<64x256xf32>
    %91 = tpu.matmul %77, %86, %cst_45 {dimension_numbers = #tpu.dot_dimension_numbers<[1], [0], [0], [1], [0, 0, 1, 1], [], []>} : vector<64x128xf32>, vector<128x256xf32>, vector<64x256xf32> -> vector<64x256xf32>
    %cst_46 = arith.constant 2.000000e+00 : f32
    %92 = vector.broadcast %cst_46 : f32 to vector<64x256xf32>
    %93 = arith.mulf %92, %91 : vector<64x256xf32>
    %94 = vector.broadcast %90 : vector<1x256xf32> to vector<64x256xf32>
    %95 = arith.subf %94, %93 : vector<64x256xf32>
    %96 = tpu.reduce_index %95 {axis = 1 : i32, kind = #tpu.reduction_kind<arg_min>} : vector<64x256xf32> -> vector<64xi32>
    %97 = vector.shape_cast %96 : vector<64xi32> to vector<64x1xi32>
    %98 = tpu.iota {dimensions = array<i32: 1>} : vector<1x256xi32>
    %99 = vector.broadcast %97 : vector<64x1xi32> to vector<64x256xi32>
    %100 = vector.broadcast %98 : vector<1x256xi32> to vector<64x256xi32>
    %101 = arith.cmpi eq, %99, %100 : vector<64x256xi32>
    %102 = arith.extui %101 : vector<64x256xi1> to vector<64x256xi32>
    %103 = arith.sitofp %102 : vector<64x256xi32> to vector<64x256xf32>
    %cst_47 = arith.constant dense<0.000000e+00> : vector<64x128xf32>
    %104 = tpu.matmul %103, %88, %cst_47 {dimension_numbers = #tpu.dot_dimension_numbers<[1], [0], [0], [1], [0, 0, 1, 1], [], []>} : vector<64x256xf32>, vector<256x128xf32>, vector<64x128xf32> -> vector<64x128xf32>
    %105 = arith.subf %77, %104 : vector<64x128xf32>
    %106 = arith.mulf %105, %105 : vector<64x128xf32>
    %107 = vector.shape_cast %106 : vector<64x128xf32> to vector<1x64x128xf32>
    %cst_48 = arith.constant dense<0.000000e+00> : vector<1xf32>
    %108 = vector.multi_reduction <add>, %107, %cst_48 [1, 2] : vector<1x64x128xf32> to vector<1xf32>
    %109 = vector.shape_cast %108 : vector<1xf32> to vector<1x1x1xf32>
    %110 = vector.extract %109[0, 0, 0] : f32 from vector<1x1x1xf32>
    %111 = vector.broadcast %110 : f32 to vector<1x1xf32>
    %112 = vector.shape_cast %96 : vector<64xi32> to vector<1x64xi32>
    %113 = arith.subf %0, %105 : vector<64x128xf32>
    %c0_49 = arith.constant 0 : index
    %c0_50 = arith.constant 0 : index
    %114 = vector.load %arg5[%c0_49, %c0_50] : memref<64x128xf32, #tpu.memory_space<vmem>>, vector<64x128xf32>
    tpu.vector_store %arg5[%c0_49, %c0_50], %113 {strides = array<i32>} : memref<64x128xf32, #tpu.memory_space<vmem>>, vector<64x128xf32>,
    %115 = tpu.concatenate %28, %56, %84, %112 in 0 : vector<1x64xi32>, vector<1x64xi32>, vector<1x64xi32>, vector<1x64xi32> -> vector<4x64xi32>
    %c0_51 = arith.constant 0 : index
    %c0_52 = arith.constant 0 : index
    %116 = vector.load %arg6[%c0_51, %c0_52] : memref<4x64xi32, #tpu.memory_space<vmem>>, vector<4x64xi32>
    tpu.vector_store %arg6[%c0_51, %c0_52], %115 {strides = array<i32>} : memref<4x64xi32, #tpu.memory_space<vmem>>, vector<4x64xi32>,
    %117 = tpu.concatenate %27, %55, %83, %111 in 1 : vector<1x1xf32>, vector<1x1xf32>, vector<1x1xf32>, vector<1x1xf32> -> vector<1x4xf32>
    %cst_53 = arith.constant 2.44140625E-4 : f32
    %118 = vector.broadcast %cst_53 : f32 to vector<1x4xf32>
    %119 = arith.mulf %117, %118 : vector<1x4xf32>
    %120 = tpu.iota {dimensions = array<i32: 0>} : vector<8x4xi32>
    %c0_i32 = arith.constant 0 : i32
    %121 = vector.broadcast %c0_i32 : i32 to vector<8x4xi32>
    %122 = arith.cmpi eq, %120, %121 : vector<8x4xi32>
    %cst_54 = arith.constant 0.000000e+00 : f32
    %123 = vector.shape_cast %119 : vector<1x4xf32> to vector<1x4xf32>
    %124 = vector.broadcast %123 : vector<1x4xf32> to vector<8x4xf32>
    %125 = vector.broadcast %cst_54 : f32 to vector<8x4xf32>
    %126 = arith.select %122, %124, %125 : vector<8x4xi1>, vector<8x4xf32>
    %c0_55 = arith.constant 0 : index
    %c0_56 = arith.constant 0 : index
    %127 = vector.load %arg7[%c0_55, %c0_56] : memref<8x4xf32, #tpu.memory_space<vmem>>, vector<8x4xf32>
    tpu.vector_store %arg7[%c0_55, %c0_56], %126 {strides = array<i32>} : memref<8x4xf32, #tpu.memory_space<vmem>>, vector<8x4xf32>,
    return
  }
  func.func @transform_0(%arg0: i32) -> (i32, i32) {
    %c0_i32 = arith.constant 0 : i32
    %c0_i32_0 = arith.constant 0 : i32
    return %arg0, %c0_i32 : i32, i32
  }
  func.func @transform_1(%arg0: i32) -> (i32, i32, i32) {
    %c0_i32 = arith.constant 0 : i32
    %c0_i32_0 = arith.constant 0 : i32
    %c0_i32_1 = arith.constant 0 : i32
    %c0_i32_2 = arith.constant 0 : i32
    return %c0_i32, %c0_i32_0, %c0_i32_1 : i32, i32, i32
  }
  func.func @transform_2(%arg0: i32) -> (i32, i32, i32) {
    %c0_i32 = arith.constant 0 : i32
    %c0_i32_0 = arith.constant 0 : i32
    %c0_i32_1 = arith.constant 0 : i32
    %c0_i32_2 = arith.constant 0 : i32
    return %c0_i32, %c0_i32_0, %c0_i32_1 : i32, i32, i32
  }
  func.func @transform_3(%arg0: i32) -> (i32, i32, i32) {
    %c0_i32 = arith.constant 0 : i32
    %c0_i32_0 = arith.constant 0 : i32
    %c0_i32_1 = arith.constant 0 : i32
    %c0_i32_2 = arith.constant 0 : i32
    return %c0_i32, %c0_i32_0, %c0_i32_1 : i32, i32, i32
  }
  func.func @transform_4(%arg0: i32) -> (i32, i32) {
    %c0_i32 = arith.constant 0 : i32
    %c0_i32_0 = arith.constant 0 : i32
    return %arg0, %c0_i32 : i32, i32
  }
  func.func @transform_5(%arg0: i32) -> (i32, i32) {
    %c0_i32 = arith.constant 0 : i32
    %c0_i32_0 = arith.constant 0 : i32
    return %c0_i32, %arg0 : i32, i32
  }
  func.func @transform_6(%arg0: i32) -> (i32, i32) {
    %c0_i32 = arith.constant 0 : i32
    %c0_i32_0 = arith.constant 0 : i32
    return %arg0, %c0_i32 : i32, i32
  }
}

</mosaic_0001>

<llo_original>
// kernel: tpu_custom_call.1
$region0: #{tpu_custom_call.1}
  #allocation0 [shape = 'u32[]', space=smem, size = 0x4, offset = 0x4, fixed_abs, tag = 'smem constant byte address 0x4 - core index']
  #allocation1 [shape = 'u32[144,128]{1,0:T(1,128)}', space=vmem, size = 0x12000, scoped, tag = 'internal scratch']
  %s0 = inlined_call_operand.hbm [shape: f32[64,128], index: 0, kind: input, shape index: {}]
  %s1 = inlined_call_operand.hbm [shape: f32[4,256,128], index: 1, kind: input, shape index: {}]
  %s2 = inlined_call_operand.hbm [shape: f32[4,128,256], index: 2, kind: input, shape index: {}]
  %s3 = inlined_call_operand.vmem [shape: f32[4,1,256], index: 3, kind: input, shape index: {}]
  %s4 = inlined_call_operand.hbm [shape: f32[64,128], index: 4, kind: output, shape index: {0}]
  %s5 = inlined_call_operand.hbm [shape: s32[4,64], index: 5, kind: output, shape index: {1}]
  %s6 = inlined_call_operand.vmem [shape: f32[8,4], index: 6, kind: output, shape index: {2}]
  %7 = xla_tuple %s4, %s5, %s6
  %s8 = sld [smem:[#allocation0]]
  $region54: #{tpu_custom_call.1} parent=0
    _
  %s10 = ssub.s32 1, %s8
  %s11 = scalar_select 0, %s10, %s8
  $region1: #{tpu_custom_call.1} parent=0
    #allocation2 [shape = 'u8[32768]{0}', space=vmem, size = 0x8000, scoped, tag = 'input window, operand 0, single buffered']
    #allocation3 [shape = 's32[1]{0}', space=sflag, size = 0x4, scoped, tag = 'scoped memory for tpu_custom_call.1']
    #allocation4 [shape = 's32[1]{0}', space=sflag, size = 0x4, scoped, tag = 'scoped memory for tpu_custom_call.1']
    #allocation5 [shape = 'u8[524288]{0}', space=vmem, size = 0x80000, scoped, tag = 'input window, operand 1, single buffered']
    #allocation6 [shape = 's32[1]{0}', space=sflag, size = 0x4, scoped, tag = 'scoped memory for tpu_custom_call.1']
    #allocation7 [shape = 'u8[524288]{0}', space=vmem, size = 0x80000, scoped, tag = 'input window, operand 2, single buffered']
    #allocation8 [shape = 'u8[32768]{0}', space=vmem, size = 0x8000, scoped, tag = 'output window, operand 0, single buffered']
    #allocation9 [shape = 'u8[2048]{0}', space=vmem, size = 0x800, scoped, tag = 'output window, operand 1, single buffered']
    #allocation10 [shape = 's32[1]{0}', space=sflag, size = 0x4, scoped, tag = 'scoped memory for tpu_custom_call.1']
    %12 = vsyncpa [#allocation3], 0
    %13 = vsyncpa [#allocation6], 0
    %14 = vsyncpa [#allocation4], 0
    %15 = vsyncpa [#allocation10], 0
    // Predicated region
    $region2: #{tpu_custom_call.1} parent=1 // pred_check
      _
    $region3: #{tpu_custom_call.1} parent=1 // pred_check_branch
      %17 = sbr.rel (0) target = $region5
    $region4: #{tpu_custom_call.1} parent=1 // pred_region
      %s19 = ssub.s32 1024, 1024
      %20 = vsyncadd [#allocation3], %s19
      %s21 = sshll.u32 [#allocation2], 4
      %s22 = int_to_ptr.vmem [resolvable:$true] %s21
      %27 = dma.hbm_to_vmem [thread:$0]  %s0, 1024, %s22, [#allocation3], 128, 128, 8
    $region5: #{tpu_custom_call.1} parent=1 // pred_fallthru
      _
    // Predicated region
    $region6: #{tpu_custom_call.1} parent=1 // pred_check
      _
    $region7: #{tpu_custom_call.1} parent=1 // pred_check_branch
      %29 = sbr.rel (0) target = $region9
    $region8: #{tpu_custom_call.1} parent=1 // pred_region
      %s31 = ssub.s32 16384, 16384
      %32 = vsyncadd [#allocation6], %s31
      %s33 = sshll.u32 [#allocation5], 4
      %s34 = int_to_ptr.vmem [resolvable:$true] %s33
      %39 = dma.hbm_to_vmem [thread:$0]  %s1, 16384, %s34, [#allocation6], 128, 128, 8
    $region9: #{tpu_custom_call.1} parent=1 // pred_fallthru
      _
    // Predicated region
    $region10: #{tpu_custom_call.1} parent=1 // pred_check
      _
    $region11: #{tpu_custom_call.1} parent=1 // pred_check_branch
      %41 = sbr.rel (0) target = $region13
    $region12: #{tpu_custom_call.1} parent=1 // pred_region
      %s43 = ssub.s32 16384, 16384
      %44 = vsyncadd [#allocation6], %s43
      %s45 = sshll.u32 [#allocation7], 4
      %s46 = int_to_ptr.vmem [resolvable:$true] %s45
      %51 = dma.hbm_to_vmem [thread:$0]  %s2, 16384, %s46, [#allocation6], 256, 256, 16
    $region13: #{tpu_custom_call.1} parent=1 // pred_fallthru
      _
    // Predicated region
    $region14: #{tpu_custom_call.1} parent=1 // pred_check
      _
    $region15: #{tpu_custom_call.1} parent=1 // pred_check_branch
      %53 = sbr.rel (0) target = $region17
    $region16: #{tpu_custom_call.1} parent=1 // pred_region
      _
    $region17: #{tpu_custom_call.1} parent=1 // pred_fallthru
      _
    // Predicated region
    $region18: #{tpu_custom_call.1} parent=1 // pred_check
      _
    $region19: #{tpu_custom_call.1} parent=1 // pred_check_branch
      %55 = sbr.rel (0) target = $region21
    $region20: #{tpu_custom_call.1} parent=1 // pred_region
      %56 = dma.done [#allocation3], 1024
    $region21: #{tpu_custom_call.1} parent=1 // pred_fallthru
      _
    // Predicated region
    $region22: #{tpu_custom_call.1} parent=1 // pred_check
      _
    $region23: #{tpu_custom_call.1} parent=1 // pred_check_branch
      %58 = sbr.rel (0) target = $region25
    $region24: #{tpu_custom_call.1} parent=1 // pred_region
      %59 = dma.done [#allocation6], 16384
    $region25: #{tpu_custom_call.1} parent=1 // pred_fallthru
      _
    // Predicated region
    $region26: #{tpu_custom_call.1} parent=1 // pred_check
      _
    $region27: #{tpu_custom_call.1} parent=1 // pred_check_branch
      %61 = sbr.rel (0) target = $region29
    $region28: #{tpu_custom_call.1} parent=1 // pred_region
      %62 = dma.done [#allocation6], 16384
    $region29: #{tpu_custom_call.1} parent=1 // pred_fallthru
      _
    %v63 = vld [vmem:[#allocation2] sm:$0xff]
    %v64 = vld [vmem:[#allocation2 + $0x8] sm:$0xff]
    %v65 = vld [vmem:[#allocation2 + $0x10] sm:$0xff]
    %v66 = vld [vmem:[#allocation2 + $0x18] sm:$0xff]
    %v67 = vld [vmem:[#allocation2 + $0x20] sm:$0xff]
    %v68 = vld [vmem:[#allocation2 + $0x28] sm:$0xff]
    %v69 = vld [vmem:[#allocation2 + $0x30] sm:$0xff]
    %v70 = vld [vmem:[#allocation2 + $0x38] sm:$0xff]
    %v71 = vld [vmem:[#allocation7] sm:$0xff]
    %v72 = vld [vmem:[#allocation7 + $0x8] sm:$0xff]
    %v73 = vld [vmem:[#allocation7 + $0x10] sm:$0xff]
    %v74 = vld [vmem:[#allocation7 + $0x18] sm:$0xff]
    %v75 = vld [vmem:[#allocation7 + $0x20] sm:$0xff]
    %v76 = vld [vmem:[#allocation7 + $0x28] sm:$0xff]
    %v77 = vld [vmem:[#allocation7 + $0x30] sm:$0xff]
    %v78 = vld [vmem:[#allocation7 + $0x38] sm:$0xff]
    %v79 = vld [vmem:[#allocation7 + $0x40] sm:$0xff]
    %v80 = vld [vmem:[#allocation7 + $0x48] sm:$0xff]
    %v81 = vld [vmem:[#allocation7 + $0x50] sm:$0xff]
    %v82 = vld [vmem:[#allocation7 + $0x58] sm:$0xff]
    %v83 = vld [vmem:[#allocation7 + $0x60] sm:$0xff]
    %v84 = vld [vmem:[#allocation7 + $0x68] sm:$0xff]
    %v85 = vld [vmem:[#allocation7 + $0x70] sm:$0xff]
    %v86 = vld [vmem:[#allocation7 + $0x78] sm:$0xff]
    %v87 = vld [vmem:[#allocation7 + $0x80] sm:$0xff]
    %v88 = vld [vmem:[#allocation7 + $0x88] sm:$0xff]
    %v89 = vld [vmem:[#allocation7 + $0x90] sm:$0xff]
    %v90 = vld [vmem:[#allocation7 + $0x98] sm:$0xff]
    %v91 = vld [vmem:[#allocation7 + $0xa0] sm:$0xff]
    %v92 = vld [vmem:[#allocation7 + $0xa8] sm:$0xff]
    %v93 = vld [vmem:[#allocation7 + $0xb0] sm:$0xff]
    %v94 = vld [vmem:[#allocation7 + $0xb8] sm:$0xff]
    %v95 = vld [vmem:[#allocation7 + $0xc0] sm:$0xff]
    %v96 = vld [vmem:[#allocation7 + $0xc8] sm:$0xff]
    %v97 = vld [vmem:[#allocation7 + $0xd0] sm:$0xff]
    %v98 = vld [vmem:[#allocation7 + $0xd8] sm:$0xff]
    %v99 = vld [vmem:[#allocation7 + $0xe0] sm:$0xff]
    %v100 = vld [vmem:[#allocation7 + $0xe8] sm:$0xff]
    %v101 = vld [vmem:[#allocation7 + $0xf0] sm:$0xff]
    %v102 = vld [vmem:[#allocation7 + $0xf8] sm:$0xff]
    %v103 = vld [vmem:[#allocation5] sm:$0xff]
    %v104 = vld [vmem:[#allocation5 + $0x8] sm:$0xff]
    %v105 = vld [vmem:[#allocation5 + $0x10] sm:$0xff]
    %v106 = vld [vmem:[#allocation5 + $0x18] sm:$0xff]
    %v107 = vld [vmem:[#allocation5 + $0x20] sm:$0xff]
    %v108 = vld [vmem:[#allocation5 + $0x28] sm:$0xff]
    %v109 = vld [vmem:[#allocation5 + $0x30] sm:$0xff]
    %v110 = vld [vmem:[#allocation5 + $0x38] sm:$0xff]
    %v111 = vld [vmem:[#allocation5 + $0x40] sm:$0xff]
    %v112 = vld [vmem:[#allocation5 + $0x48] sm:$0xff]
    %v113 = vld [vmem:[#allocation5 + $0x50] sm:$0xff]
    %v114 = vld [vmem:[#allocation5 + $0x58] sm:$0xff]
    %v115 = vld [vmem:[#allocation5 + $0x60] sm:$0xff]
    %v116 = vld [vmem:[#allocation5 + $0x68] sm:$0xff]
    %v117 = vld [vmem:[#allocation5 + $0x70] sm:$0xff]
    %v118 = vld [vmem:[#allocation5 + $0x78] sm:$0xff]
    %v119 = vld [vmem:[#allocation5 + $0x80] sm:$0xff]
    %v120 = vld [vmem:[#allocation5 + $0x88] sm:$0xff]
    %v121 = vld [vmem:[#allocation5 + $0x90] sm:$0xff]
    %v122 = vld [vmem:[#allocation5 + $0x98] sm:$0xff]
    %v123 = vld [vmem:[#allocation5 + $0xa0] sm:$0xff]
    %v124 = vld [vmem:[#allocation5 + $0xa8] sm:$0xff]
    %v125 = vld [vmem:[#allocation5 + $0xb0] sm:$0xff]
    %v126 = vld [vmem:[#allocation5 + $0xb8] sm:$0xff]
    %v127 = vld [vmem:[#allocation5 + $0xc0] sm:$0xff]
    %v128 = vld [vmem:[#allocation5 + $0xc8] sm:$0xff]
    %v129 = vld [vmem:[#allocation5 + $0xd0] sm:$0xff]
    %v130 = vld [vmem:[#allocation5 + $0xd8] sm:$0xff]
    %v131 = vld [vmem:[#allocation5 + $0xe0] sm:$0xff]
    %v132 = vld [vmem:[#allocation5 + $0xe8] sm:$0xff]
    %v133 = vld [vmem:[#allocation5 + $0xf0] sm:$0xff]
    %v134 = vld [vmem:[#allocation5 + $0xf8] sm:$0xff]
    %v135 = vld [vmem:[%s3] sm:$0x3]
    %136 = vmatprep.subr.mxu0 %v72
    %137 = vmatpush1.msra.mxu0 %v71
    %138 = vmatprep.subr.mxu0 %v74
    %139 = vmatpush1.msra.mxu0 %v73
    %140 = vmatprep.subr.mxu0 %v76
    %141 = vmatpush1.msra.mxu0 %v75
    %142 = vmatprep.subr.mxu0 %v78
    %143 = vmatpush1.msra.mxu0 %v77
    %144 = vmatprep.subr.mxu0 %v80
    %145 = vmatpush1.msra.mxu0 %v79
    %146 = vmatprep.subr.mxu0 %v82
    %147 = vmatpush1.msra.mxu0 %v81
    %148 = vmatprep.subr.mxu0 %v84
    %149 = vmatpush1.msra.mxu0 %v83
    %150 = vmatprep.subr.mxu0 %v86
    %151 = vmatpush1.msra.mxu0 %v85
    %152 = vmatprep.subr.mxu0 %v88
    %153 = vmatpush1.msra.mxu0 %v87
    %154 = vmatprep.subr.mxu0 %v90
    %155 = vmatpush1.msra.mxu0 %v89
    %156 = vmatprep.subr.mxu0 %v92
    %157 = vmatpush1.msra.mxu0 %v91
    %158 = vmatprep.subr.mxu0 %v94
    %159 = vmatpush1.msra.mxu0 %v93
    %160 = vmatprep.subr.mxu0 %v96
    %161 = vmatpush1.msra.mxu0 %v95
    %162 = vmatprep.subr.mxu0 %v98
    %163 = vmatpush1.msra.mxu0 %v97
    %164 = vmatprep.subr.mxu0 %v100
    %165 = vmatpush1.msra.mxu0 %v99
    %166 = vmatprep.subr.mxu0 %v102
    %167 = vmatpush1.msra.mxu0 %v101
    %168 = vmatprep.subr.mxu0 0.0
    %169 = vmatpush1.msra.mxu0 0.0
    %170 = vmatprep.subr.mxu0 0.0
    %171 = vmatpush1.msra.mxu0 0.0
    %172 = vmatprep.subr.mxu0 0.0
    %173 = vmatpush1.msra.mxu0 0.0
    %174 = vmatprep.subr.mxu0 0.0
    %175 = vmatpush1.msra.mxu0 0.0
    %176 = vmatprep.subr.mxu0 0.0
    %177 = vmatpush1.msra.mxu0 0.0
    %178 = vmatprep.subr.mxu0 0.0
    %179 = vmatpush1.msra.mxu0 0.0
    %180 = vmatprep.subr.mxu0 0.0
    %181 = vmatpush1.msra.mxu0 0.0
    %182 = vmatprep.subr.mxu0 0.0
    %183 = vmatpush1.msra.mxu0 0.0
    %184 = vmatprep.subr.mxu0 0.0
    %185 = vmatpush1.msra.mxu0 0.0
    %186 = vmatprep.subr.mxu0 0.0
    %187 = vmatpush1.msra.mxu0 0.0
    %188 = vmatprep.subr.mxu0 0.0
    %189 = vmatpush1.msra.mxu0 0.0
    %190 = vmatprep.subr.mxu0 0.0
    %191 = vmatpush1.msra.mxu0 0.0
    %192 = vmatprep.subr.mxu0 0.0
    %193 = vmatpush1.msra.mxu0 0.0
    %194 = vmatprep.subr.mxu0 0.0
    %195 = vmatpush1.msra.mxu0 0.0
    %196 = vmatprep.subr.mxu0 0.0
    %197 = vmatpush1.msra.mxu0 0.0
    %198 = vmatprep.subr.mxu0 0.0
    %199 = vmatpush1.msra.mxu0 0.0
    %200 = vmatprep.mubr.f32.mxu0 0.0
    %201 = vmatmul.mubr.f32.gmra.mrb[0].mxu0 %v63
    %v202 = vpop.f32.mrb[0].mxu0
    %v203 = vadd.f32 0.0, %v202
    %v204 = vpop.f32.mrb[0].mxu0
    %v205 = vadd.f32 0.0, %v204
    %206 = vmatprep.mubr.f32.mxu0 0.0
    %207 = vmatmul.mubr.f32.gmra.mrb[0].mxu0 %v64
    %v208 = vpop.f32.mrb[0].mxu0
    %v209 = vadd.f32 0.0, %v208
    %v210 = vpop.f32.mrb[0].mxu0
    %v211 = vadd.f32 0.0, %v210
    %212 = vmatprep.mubr.f32.mxu0 0.0
    %213 = vmatmul.mubr.f32.gmra.mrb[0].mxu0 %v65
    %v214 = vpop.f32.mrb[0].mxu0
    %v215 = vadd.f32 0.0, %v214
    %v216 = vpop.f32.mrb[0].mxu0
    %v217 = vadd.f32 0.0, %v216
    %218 = vmatprep.mubr.f32.mxu0 0.0
    %219 = vmatmul.mubr.f32.gmra.mrb[0].mxu0 %v66
    %v220 = vpop.f32.mrb[0].mxu0
    %v221 = vadd.f32 0.0, %v220
    %v222 = vpop.f32.mrb[0].mxu0
    %v223 = vadd.f32 0.0, %v222
    %224 = vmatprep.mubr.f32.mxu0 0.0
    %225 = vmatmul.mubr.f32.gmra.mrb[0].mxu0 %v67
    %v226 = vpop.f32.mrb[0].mxu0
    %v227 = vadd.f32 0.0, %v226
    %v228 = vpop.f32.mrb[0].mxu0
    %v229 = vadd.f32 0.0, %v228
    %230 = vmatprep.mubr.f32.mxu0 0.0
    %231 = vmatmul.mubr.f32.gmra.mrb[0].mxu0 %v68
    %v232 = vpop.f32.mrb[0].mxu0
    %v233 = vadd.f32 0.0, %v232
    %v234 = vpop.f32.mrb[0].mxu0
    %v235 = vadd.f32 0.0, %v234
    %236 = vmatprep.mubr.f32.mxu0 0.0
    %237 = vmatmul.mubr.f32.gmra.mrb[0].mxu0 %v69
    %v238 = vpop.f32.mrb[0].mxu0
    %v239 = vadd.f32 0.0, %v238
    %v240 = vpop.f32.mrb[0].mxu0
    %v241 = vadd.f32 0.0, %v240
    %242 = vmatprep.mubr.f32.mxu0 0.0
    %243 = vmatmul.mubr.f32.gmra.mrb[0].mxu0 %v70
    %v244 = vpop.f32.mrb[0].mxu0
    %v245 = vadd.f32 0.0, %v244
    %v246 = vpop.f32.mrb[0].mxu0
    %v247 = vadd.f32 0.0, %v246
    %248 = vdwg.mxu0
    %v249 = vmul.f32 %v203, 2.0
    %v250 = vmul.f32 %v205, 2.0
    %v251 = vmul.f32 %v209, 2.0
    %v252 = vmul.f32 %v211, 2.0
    %v253 = vmul.f32 %v215, 2.0
    %v254 = vmul.f32 %v217, 2.0
    %v255 = vmul.f32 %v221, 2.0
    %v256 = vmul.f32 %v223, 2.0
    %v257 = vmul.f32 %v227, 2.0
    %v258 = vmul.f32 %v229, 2.0
    %v259 = vmul.f32 %v233, 2.0
    %v260 = vmul.f32 %v235, 2.0
    %v261 = vmul.f32 %v239, 2.0
    %v262 = vmul.f32 %v241, 2.0
    %v263 = vmul.f32 %v245, 2.0
    %v264 = vmul.f32 %v247, 2.0
    %v266 = vlaneseq
    %v267 = vshrl.u32 %v266, 7
    %v268 = vsub.s32 0, %v267
    %v269 = vrot.slane %v135, %v268
    %v270 = vlaneseq
    %v271 = vshrl.u32 %v270, 7
    %v272 = vsub.s32 1, %v271
    %v273 = vrot.slane %v135, %v272
    %v276 = vsub.f32 %v269, %v249
    %v277 = vsub.f32 %v273, %v250
    %v278 = vsub.f32 %v269, %v251
    %v279 = vsub.f32 %v273, %v252
    %v280 = vsub.f32 %v269, %v253
    %v281 = vsub.f32 %v273, %v254
    %v282 = vsub.f32 %v269, %v255
    %v283 = vsub.f32 %v273, %v256
    %v284 = vsub.f32 %v269, %v257
    %v285 = vsub.f32 %v273, %v258
    %v286 = vsub.f32 %v269, %v259
    %v287 = vsub.f32 %v273, %v260
    %v288 = vsub.f32 %v269, %v261
    %v289 = vsub.f32 %v273, %v262
    %v290 = vsub.f32 %v269, %v263
    %v291 = vsub.f32 %v273, %v264
    %v292 = vlaneseq
    %v293 = vand.u32 %v292, 127
    %v294 = vadd.s32 %v293, 128
    %vm295 = vcmp.le.f32.partialorder %v276, %v277
    %v296 = vsel %vm295, %v276, %v277
    %v297 = vsel %vm295, %v293, %v294
    %298 = vmin.index.xlane.f32.xlu0 %v296
    %v299 = vpop.xlane.xlu0 %298
    %300 = vset.pattern.permute.xlu0 %v299
    %301 = vperm.xlu0 %300, %v297
    %v302 = vpop.permute.xlu0 %301
    %vm303 = vcmp.le.f32.partialorder %v278, %v279
    %v304 = vsel %vm303, %v278, %v279
    %v305 = vsel %vm303, %v293, %v294
    %306 = vmin.index.xlane.f32.xlu0 %v304
    %v307 = vpop.xlane.xlu0 %306
    %308 = vset.pattern.permute.xlu0 %v307
    %309 = vperm.xlu0 %308, %v305
    %v310 = vpop.permute.xlu0 %309
    %vm311 = vcmp.le.f32.partialorder %v280, %v281
    %v312 = vsel %vm311, %v280, %v281
    %v313 = vsel %vm311, %v293, %v294
    %314 = vmin.index.xlane.f32.xlu0 %v312
    %v315 = vpop.xlane.xlu0 %314
    %316 = vset.pattern.permute.xlu0 %v315
    %317 = vperm.xlu0 %316, %v313
    %v318 = vpop.permute.xlu0 %317
    %vm319 = vcmp.le.f32.partialorder %v282, %v283
    %v320 = vsel %vm319, %v282, %v283
    %v321 = vsel %vm319, %v293, %v294
    %322 = vmin.index.xlane.f32.xlu0 %v320
    %v323 = vpop.xlane.xlu0 %322
    %324 = vset.pattern.permute.xlu0 %v323
    %325 = vperm.xlu0 %324, %v321
    %v326 = vpop.permute.xlu0 %325
    %vm327 = vcmp.le.f32.partialorder %v284, %v285
    %v328 = vsel %vm327, %v284, %v285
    %v329 = vsel %vm327, %v293, %v294
    %330 = vmin.index.xlane.f32.xlu0 %v328
    %v331 = vpop.xlane.xlu0 %330
    %332 = vset.pattern.permute.xlu0 %v331
    %333 = vperm.xlu0 %332, %v329
    %v334 = vpop.permute.xlu0 %333
    %vm335 = vcmp.le.f32.partialorder %v286, %v287
    %v336 = vsel %vm335, %v286, %v287
    %v337 = vsel %vm335, %v293, %v294
    %338 = vmin.index.xlane.f32.xlu0 %v336
    %v339 = vpop.xlane.xlu0 %338
    %340 = vset.pattern.permute.xlu0 %v339
    %341 = vperm.xlu0 %340, %v337
    %v342 = vpop.permute.xlu0 %341
    %vm343 = vcmp.le.f32.partialorder %v288, %v289
    %v344 = vsel %vm343, %v288, %v289
    %v345 = vsel %vm343, %v293, %v294
    %346 = vmin.index.xlane.f32.xlu0 %v344
    %v347 = vpop.xlane.xlu0 %346
    %348 = vset.pattern.permute.xlu0 %v347
    %349 = vperm.xlu0 %348, %v345
    %v350 = vpop.permute.xlu0 %349
    %vm351 = vcmp.le.f32.partialorder %v290, %v291
    %v352 = vsel %vm351, %v290, %v291
    %v353 = vsel %vm351, %v293, %v294
    %354 = vmin.index.xlane.f32.xlu0 %v352
    %v355 = vpop.xlane.xlu0 %354
    %356 = vset.pattern.permute.xlu0 %v355
    %357 = vperm.xlu0 %356, %v353
    %v358 = vpop.permute.xlu0 %357
    %vm359 = vcmp.eq.s32.totalorder %v302, %v293
    %vm360 = vcmp.eq.s32.totalorder %v302, %v294
    %vm361 = vcmp.eq.s32.totalorder %v310, %v293
    %vm362 = vcmp.eq.s32.totalorder %v310, %v294
    %vm363 = vcmp.eq.s32.totalorder %v318, %v293
    %vm364 = vcmp.eq.s32.totalorder %v318, %v294
    %vm365 = vcmp.eq.s32.totalorder %v326, %v293
    %vm366 = vcmp.eq.s32.totalorder %v326, %v294
    %vm367 = vcmp.eq.s32.totalorder %v334, %v293
    %vm368 = vcmp.eq.s32.totalorder %v334, %v294
    %vm369 = vcmp.eq.s32.totalorder %v342, %v293
    %vm370 = vcmp.eq.s32.totalorder %v342, %v294
    %vm371 = vcmp.eq.s32.totalorder %v350, %v293
    %vm372 = vcmp.eq.s32.totalorder %v350, %v294
    %vm373 = vcmp.eq.s32.totalorder %v358, %v293
    %vm374 = vcmp.eq.s32.totalorder %v358, %v294
    %v375 = vsel %vm359, 1, 0
    %v376 = vsel %vm360, 1, 0
    %v377 = vsel %vm361, 1, 0
    %v378 = vsel %vm362, 1, 0
    %v379 = vsel %vm363, 1, 0
    %v380 = vsel %vm364, 1, 0
    %v381 = vsel %vm365, 1, 0
    %v382 = vsel %vm366, 1, 0
    %v383 = vsel %vm367, 1, 0
    %v384 = vsel %vm368, 1, 0
    %v385 = vsel %vm369, 1, 0
    %v386 = vsel %vm370, 1, 0
    %v387 = vsel %vm371, 1, 0
    %v388 = vsel %vm372, 1, 0
    %v389 = vsel %vm373, 1, 0
    %v390 = vsel %vm374, 1, 0
    %v391 = vcvt.s32.f32 %v375
    %v392 = vcvt.s32.f32 %v376
    %v393 = vcvt.s32.f32 %v377
    %v394 = vcvt.s32.f32 %v378
    %v395 = vcvt.s32.f32 %v379
    %v396 = vcvt.s32.f32 %v380
    %v397 = vcvt.s32.f32 %v381
    %v398 = vcvt.s32.f32 %v382
    %v399 = vcvt.s32.f32 %v383
    %v400 = vcvt.s32.f32 %v384
    %v401 = vcvt.s32.f32 %v385
    %v402 = vcvt.s32.f32 %v386
    %v403 = vcvt.s32.f32 %v387
    %v404 = vcvt.s32.f32 %v388
    %v405 = vcvt.s32.f32 %v389
    %v406 = vcvt.s32.f32 %v390
    %407 = vmatprep.subr.mxu0 0.0
    %408 = vmatpush1.msra.mxu0 %v103
    %409 = vmatprep.subr.mxu0 0.0
    %410 = vmatpush1.msra.mxu0 %v104
    %411 = vmatprep.subr.mxu0 0.0
    %412 = vmatpush1.msra.mxu0 %v105
    %413 = vmatprep.subr.mxu0 0.0
    %414 = vmatpush1.msra.mxu0 %v106
    %415 = vmatprep.subr.mxu0 0.0
    %416 = vmatpush1.msra.mxu0 %v107
    %417 = vmatprep.subr.mxu0 0.0
    %418 = vmatpush1.msra.mxu0 %v108
    %419 = vmatprep.subr.mxu0 0.0
    %420 = vmatpush1.msra.mxu0 %v109
    %421 = vmatprep.subr.mxu0 0.0
    %422 = vmatpush1.msra.mxu0 %v110
    %423 = vmatprep.subr.mxu0 0.0
    %424 = vmatpush1.msra.mxu0 %v111
    %425 = vmatprep.subr.mxu0 0.0
    %426 = vmatpush1.msra.mxu0 %v112
    %427 = vmatprep.subr.mxu0 0.0
    %428 = vmatpush1.msra.mxu0 %v113
    %429 = vmatprep.subr.mxu0 0.0
    %430 = vmatpush1.msra.mxu0 %v114
    %431 = vmatprep.subr.mxu0 0.0
    %432 = vmatpush1.msra.mxu0 %v115
    %433 = vmatprep.subr.mxu0 0.0
    %434 = vmatpush1.msra.mxu0 %v116
    %435 = vmatprep.subr.mxu0 0.0
    %436 = vmatpush1.msra.mxu0 %v117
    %437 = vmatprep.subr.mxu0 0.0
    %438 = vmatpush1.msra.mxu0 %v118
    %439 = vmatprep.subr.mxu0 0.0
    %440 = vmatpush1.msra.mxu0 %v119
    %441 = vmatprep.subr.mxu0 0.0
    %442 = vmatpush1.msra.mxu0 %v120
    %443 = vmatprep.subr.mxu0 0.0
    %444 = vmatpush1.msra.mxu0 %v121
    %445 = vmatprep.subr.mxu0 0.0
    %446 = vmatpush1.msra.mxu0 %v122
    %447 = vmatprep.subr.mxu0 0.0
    %448 = vmatpush1.msra.mxu0 %v123
    %449 = vmatprep.subr.mxu0 0.0
    %450 = vmatpush1.msra.mxu0 %v124
    %451 = vmatprep.subr.mxu0 0.0
    %452 = vmatpush1.msra.mxu0 %v125
    %453 = vmatprep.subr.mxu0 0.0
    %454 = vmatpush1.msra.mxu0 %v126
    %455 = vmatprep.subr.mxu0 0.0
    %456 = vmatpush1.msra.mxu0 %v127
    %457 = vmatprep.subr.mxu0 0.0
    %458 = vmatpush1.msra.mxu0 %v128
    %459 = vmatprep.subr.mxu0 0.0
    %460 = vmatpush1.msra.mxu0 %v129
    %461 = vmatprep.subr.mxu0 0.0
    %462 = vmatpush1.msra.mxu0 %v130
    %463 = vmatprep.subr.mxu0 0.0
    %464 = vmatpush1.msra.mxu0 %v131
    %465 = vmatprep.subr.mxu0 0.0
    %466 = vmatpush1.msra.mxu0 %v132
    %467 = vmatprep.subr.mxu0 0.0
    %468 = vmatpush1.msra.mxu0 %v133
    %469 = vmatprep.subr.mxu0 0.0
    %470 = vmatpush1.msra.mxu0 %v134
    %471 = vmatprep.mubr.f32.mxu0 %v392
    %472 = vmatmul.mubr.f32.gmra.mrb[0].mxu0 %v391
    %v473 = vpop.f32.mrb[0].mxu0
    %v474 = vadd.f32 0.0, %v473
    %v475 = vpop.f32.mrb[0].mxu0
    %476 = vmatprep.mubr.f32.mxu0 %v394
    %477 = vmatmul.mubr.f32.gmra.mrb[0].mxu0 %v393
    %v478 = vpop.f32.mrb[0].mxu0
    %v479 = vadd.f32 0.0, %v478
    %v480 = vpop.f32.mrb[0].mxu0
    %481 = vmatprep.mubr.f32.mxu0 %v396
    %482 = vmatmul.mubr.f32.gmra.mrb[0].mxu0 %v395
    %v483 = vpop.f32.mrb[0].mxu0
    %v484 = vadd.f32 0.0, %v483
    %v485 = vpop.f32.mrb[0].mxu0
    %486 = vmatprep.mubr.f32.mxu0 %v398
    %487 = vmatmul.mubr.f32.gmra.mrb[0].mxu0 %v397
    %v488 = vpop.f32.mrb[0].mxu0
    %v489 = vadd.f32 0.0, %v488
    %v490 = vpop.f32.mrb[0].mxu0
    %491 = vmatprep.mubr.f32.mxu0 %v400
    %492 = vmatmul.mubr.f32.gmra.mrb[0].mxu0 %v399
    %v493 = vpop.f32.mrb[0].mxu0
    %v494 = vadd.f32 0.0, %v493
    %v495 = vpop.f32.mrb[0].mxu0
    %496 = vmatprep.mubr.f32.mxu0 %v402
    %497 = vmatmul.mubr.f32.gmra.mrb[0].mxu0 %v401
    %v498 = vpop.f32.mrb[0].mxu0
    %v499 = vadd.f32 0.0, %v498
    %v500 = vpop.f32.mrb[0].mxu0
    %501 = vmatprep.mubr.f32.mxu0 %v404
    %502 = vmatmul.mubr.f32.gmra.mrb[0].mxu0 %v403
    %v503 = vpop.f32.mrb[0].mxu0
    %v504 = vadd.f32 0.0, %v503
    %v505 = vpop.f32.mrb[0].mxu0
    %506 = vmatprep.mubr.f32.mxu0 %v406
    %507 = vmatmul.mubr.f32.gmra.mrb[0].mxu0 %v405
    %v508 = vpop.f32.mrb[0].mxu0
    %v509 = vadd.f32 0.0, %v508
    %v510 = vpop.f32.mrb[0].mxu0
    %511 = vdwg.mxu0
    %v512 = vsub.f32 %v63, %v474
    %v513 = vsub.f32 %v64, %v479
    %v514 = vsub.f32 %v65, %v484
    %v515 = vsub.f32 %v66, %v489
    %v516 = vsub.f32 %v67, %v494
    %v517 = vsub.f32 %v68, %v499
    %v518 = vsub.f32 %v69, %v504
    %v519 = vsub.f32 %v70, %v509
    %v520 = vmul.f32 %v512, %v512
    %v521 = vmul.f32 %v513, %v513
    %v522 = vmul.f32 %v514, %v514
    %v523 = vmul.f32 %v515, %v515
    %v524 = vmul.f32 %v516, %v516
    %v525 = vmul.f32 %v517, %v517
    %v526 = vmul.f32 %v518, %v518
    %v527 = vmul.f32 %v519, %v519
    %v528 = vadd.f32 %v520, %v521
    %v529 = vadd.f32 %v528, %v522
    %v530 = vadd.f32 %v529, %v523
    %v531 = vadd.f32 %v530, %v524
    %v532 = vadd.f32 %v531, %v525
    %v533 = vadd.f32 %v532, %v526
    %v534 = vadd.f32 %v533, %v527
    %535 = vadd.xlane.f32.xlu0 %v534
    %v536 = vpop.xlane.xlu0 %535
    %v537 = vrot.slane %v536, 4
    %v538 = vadd.f32 %v536, %v537
    %v539 = vrot.slane %v538, 2
    %v540 = vadd.f32 %v538, %v539
    %v541 = vrot.slane %v540, 1
    %v542 = vadd.f32 %v540, %v541
    %s543 = vtos %v542
    %v544 = vstv %s543
    %s545 = scalar_lea.vmem [#allocation7], 256
    %v546 = vld [vmem:[%s545] sm:$0xff]
    %v547 = vld [vmem:[%s545 + $0x8] sm:$0xff]
    %v548 = vld [vmem:[%s545 + $0x10] sm:$0xff]
    %v549 = vld [vmem:[%s545 + $0x18] sm:$0xff]
    %v550 = vld [vmem:[%s545 + $0x20] sm:$0xff]
    %v551 = vld [vmem:[%s545 + $0x28] sm:$0xff]
    %v552 = vld [vmem:[%s545 + $0x30] sm:$0xff]
    %v553 = vld [vmem:[%s545 + $0x38] sm:$0xff]
    %v554 = vld [vmem:[%s545 + $0x40] sm:$0xff]
    %v555 = vld [vmem:[%s545 + $0x48] sm:$0xff]
    %v556 = vld [vmem:[%s545 + $0x50] sm:$0xff]
    %v557 = vld [vmem:[%s545 + $0x58] sm:$0xff]
    %v558 = vld [vmem:[%s545 + $0x60] sm:$0xff]
    %v559 = vld [vmem:[%s545 + $0x68] sm:$0xff]
    %v560 = vld [vmem:[%s545 + $0x70] sm:$0xff]
    %v561 = vld [vmem:[%s545 + $0x78] sm:$0xff]
    %v562 = vld [vmem:[%s545 + $0x80] sm:$0xff]
    %v563 = vld [vmem:[%s545 + $0x88] sm:$0xff]
    %v564 = vld [vmem:[%s545 + $0x90] sm:$0xff]
    %v565 = vld [vmem:[%s545 + $0x98] sm:$0xff]
    %v566 = vld [vmem:[%s545 + $0xa0] sm:$0xff]
    %v567 = vld [vmem:[%s545 + $0xa8] sm:$0xff]
    %v568 = vld [vmem:[%s545 + $0xb0] sm:$0xff]
    %v569 = vld [vmem:[%s545 + $0xb8] sm:$0xff]
    %v570 = vld [vmem:[%s545 + $0xc0] sm:$0xff]
    %v571 = vld [vmem:[%s545 + $0xc8] sm:$0xff]
    %v572 = vld [vmem:[%s545 + $0xd0] sm:$0xff]
    %v573 = vld [vmem:[%s545 + $0xd8] sm:$0xff]
    %v574 = vld [vmem:[%s545 + $0xe0] sm:$0xff]
    %v575 = vld [vmem:[%s545 + $0xe8] sm:$0xff]
    %v576 = vld [vmem:[%s545 + $0xf0] sm:$0xff]
    %v577 = vld [vmem:[%s545 + $0xf8] sm:$0xff]
    %s578 = scalar_lea.vmem [#allocation5], 256
    %v579 = vld [vmem:[%s578] sm:$0xff]
    %v580 = vld [vmem:[%s578 + $0x8] sm:$0xff]
    %v581 = vld [vmem:[%s578 + $0x10] sm:$0xff]
    %v582 = vld [vmem:[%s578 + $0x18] sm:$0xff]
    %v583 = vld [vmem:[%s578 + $0x20] sm:$0xff]
    %v584 = vld [vmem:[%s578 + $0x28] sm:$0xff]
    %v585 = vld [vmem:[%s578 + $0x30] sm:$0xff]
    %v586 = vld [vmem:[%s578 + $0x38] sm:$0xff]
    %v587 = vld [vmem:[%s578 + $0x40] sm:$0xff]
    %v588 = vld [vmem:[%s578 + $0x48] sm:$0xff]
    %v589 = vld [vmem:[%s578 + $0x50] sm:$0xff]
    %v590 = vld [vmem:[%s578 + $0x58] sm:$0xff]
    %v591 = vld [vmem:[%s578 + $0x60] sm:$0xff]
    %v592 = vld [vmem:[%s578 + $0x68] sm:$0xff]
    %v593 = vld [vmem:[%s578 + $0x70] sm:$0xff]
    %v594 = vld [vmem:[%s578 + $0x78] sm:$0xff]
    %v595 = vld [vmem:[%s578 + $0x80] sm:$0xff]
    %v596 = vld [vmem:[%s578 + $0x88] sm:$0xff]
    %v597 = vld [vmem:[%s578 + $0x90] sm:$0xff]
    %v598 = vld [vmem:[%s578 + $0x98] sm:$0xff]
    %v599 = vld [vmem:[%s578 + $0xa0] sm:$0xff]
    %v600 = vld [vmem:[%s578 + $0xa8] sm:$0xff]
    %v601 = vld [vmem:[%s578 + $0xb0] sm:$0xff]
    %v602 = vld [vmem:[%s578 + $0xb8] sm:$0xff]
    %v603 = vld [vmem:[%s578 + $0xc0] sm:$0xff]
    %v604 = vld [vmem:[%s578 + $0xc8] sm:$0xff]
    %v605 = vld [vmem:[%s578 + $0xd0] sm:$0xff]
    %v606 = vld [vmem:[%s578 + $0xd8] sm:$0xff]
    %v607 = vld [vmem:[%s578 + $0xe0] sm:$0xff]
    %v608 = vld [vmem:[%s578 + $0xe8] sm:$0xff]
    %v609 = vld [vmem:[%s578 + $0xf0] sm:$0xff]
    %v610 = vld [vmem:[%s578 + $0xf8] sm:$0xff]
    %s611 = scalar_lea.vmem %s3, 2
    %v612 = vld [vmem:[%s611] sm:$0x3]
    %613 = vmatprep.subr.mxu0 %v547
    %614 = vmatpush1.msra.mxu0 %v546
    %615 = vmatprep.subr.mxu0 %v549
    %616 = vmatpush1.msra.mxu0 %v548
    %617 = vmatprep.subr.mxu0 %v551
    %618 = vmatpush1.msra.mxu0 %v550
    %619 = vmatprep.subr.mxu0 %v553
    %620 = vmatpush1.msra.mxu0 %v552
    %621 = vmatprep.subr.mxu0 %v555
    %622 = vmatpush1.msra.mxu0 %v554
    %623 = vmatprep.subr.mxu0 %v557
    %624 = vmatpush1.msra.mxu0 %v556
    %625 = vmatprep.subr.mxu0 %v559
    %626 = vmatpush1.msra.mxu0 %v558
    %627 = vmatprep.subr.mxu0 %v561
    %628 = vmatpush1.msra.mxu0 %v560
    %629 = vmatprep.subr.mxu0 %v563
    %630 = vmatpush1.msra.mxu0 %v562
    %631 = vmatprep.subr.mxu0 %v565
    %632 = vmatpush1.msra.mxu0 %v564
    %633 = vmatprep.subr.mxu0 %v567
    %634 = vmatpush1.msra.mxu0 %v566
    %635 = vmatprep.subr.mxu0 %v569
    %636 = vmatpush1.msra.mxu0 %v568
    %637 = vmatprep.subr.mxu0 %v571
    %638 = vmatpush1.msra.mxu0 %v570
    %639 = vmatprep.subr.mxu0 %v573
    %640 = vmatpush1.msra.mxu0 %v572
    %641 = vmatprep.subr.mxu0 %v575
    %642 = vmatpush1.msra.mxu0 %v574
    %643 = vmatprep.subr.mxu0 %v577
    %644 = vmatpush1.msra.mxu0 %v576
    %645 = vmatprep.subr.mxu0 0.0
    %646 = vmatpush1.msra.mxu0 0.0
    %647 = vmatprep.subr.mxu0 0.0
    %648 = vmatpush1.msra.mxu0 0.0
    %649 = vmatprep.subr.mxu0 0.0
    %650 = vmatpush1.msra.mxu0 0.0
    %651 = vmatprep.subr.mxu0 0.0
    %652 = vmatpush1.msra.mxu0 0.0
    %653 = vmatprep.subr.mxu0 0.0
    %654 = vmatpush1.msra.mxu0 0.0
    %655 = vmatprep.subr.mxu0 0.0
    %656 = vmatpush1.msra.mxu0 0.0
    %657 = vmatprep.subr.mxu0 0.0
    %658 = vmatpush1.msra.mxu0 0.0
    %659 = vmatprep.subr.mxu0 0.0
    %660 = vmatpush1.msra.mxu0 0.0
    %661 = vmatprep.subr.mxu0 0.0
    %662 = vmatpush1.msra.mxu0 0.0
    %663 = vmatprep.subr.mxu0 0.0
    %664 = vmatpush1.msra.mxu0 0.0
    %665 = vmatprep.subr.mxu0 0.0
    %666 = vmatpush1.msra.mxu0 0.0
    %667 = vmatprep.subr.mxu0 0.0
    %668 = vmatpush1.msra.mxu0 0.0
    %669 = vmatprep.subr.mxu0 0.0
    %670 = vmatpush1.msra.mxu0 0.0
    %671 = vmatprep.subr.mxu0 0.0
    %672 = vmatpush1.msra.mxu0 0.0
    %673 = vmatprep.subr.mxu0 0.0
    %674 = vmatpush1.msra.mxu0 0.0
    %675 = vmatprep.subr.mxu0 0.0
    %676 = vmatpush1.msra.mxu0 0.0
    %677 = vmatprep.mubr.f32.mxu0 0.0
    %678 = vmatmul.mubr.f32.gmra.mrb[0].mxu0 %v512
    %v679 = vpop.f32.mrb[0].mxu0
    %v680 = vadd.f32 0.0, %v679
    %v681 = vpop.f32.mrb[0].mxu0
    %v682 = vadd.f32 0.0, %v681
    %683 = vmatprep.mubr.f32.mxu0 0.0
    %684 = vmatmul.mubr.f32.gmra.mrb[0].mxu0 %v513
    %v685 = vpop.f32.mrb[0].mxu0
    %v686 = vadd.f32 0.0, %v685
    %v687 = vpop.f32.mrb[0].mxu0
    %v688 = vadd.f32 0.0, %v687
    %689 = vmatprep.mubr.f32.mxu0 0.0
    %690 = vmatmul.mubr.f32.gmra.mrb[0].mxu0 %v514
    %v691 = vpop.f32.mrb[0].mxu0
    %v692 = vadd.f32 0.0, %v691
    %v693 = vpop.f32.mrb[0].mxu0
    %v694 = vadd.f32 0.0, %v693
    %695 = vmatprep.mubr.f32.mxu0 0.0
    %696 = vmatmul.mubr.f32.gmra.mrb[0].mxu0 %v515
    %v697 = vpop.f32.mrb[0].mxu0
    %v698 = vadd.f32 0.0, %v697
    %v699 = vpop.f32.mrb[0].mxu0
    %v700 = vadd.f32 0.0, %v699
    %701 = vmatprep.mubr.f32.mxu0 0.0
    %702 = vmatmul.mubr.f32.gmra.mrb[0].mxu0 %v516
    %v703 = vpop.f32.mrb[0].mxu0
    %v704 = vadd.f32 0.0, %v703
    %v705 = vpop.f32.mrb[0].mxu0
    %v706 = vadd.f32 0.0, %v705
    %707 = vmatprep.mubr.f32.mxu0 0.0
    %708 = vmatmul.mubr.f32.gmra.mrb[0].mxu0 %v517
    %v709 = vpop.f32.mrb[0].mxu0
    %v710 = vadd.f32 0.0, %v709
    %v711 = vpop.f32.mrb[0].mxu0
    %v712 = vadd.f32 0.0, %v711
    %713 = vmatprep.mubr.f32.mxu0 0.0
    %714 = vmatmul.mubr.f32.gmra.mrb[0].mxu0 %v518
    %v715 = vpop.f32.mrb[0].mxu0
    %v716 = vadd.f32 0.0, %v715
    %v717 = vpop.f32.mrb[0].mxu0
    %v718 = vadd.f32 0.0, %v717
    %719 = vmatprep.mubr.f32.mxu0 0.0
    %720 = vmatmul.mubr.f32.gmra.mrb[0].mxu0 %v519
    %v721 = vpop.f32.mrb[0].mxu0
    %v722 = vadd.f32 0.0, %v721
    %v723 = vpop.f32.mrb[0].mxu0
    %v724 = vadd.f32 0.0, %v723
    %725 = vdwg.mxu0
    %v726 = vmul.f32 %v680, 2.0
    %v727 = vmul.f32 %v682, 2.0
    %v728 = vmul.f32 %v686, 2.0
    %v729 = vmul.f32 %v688, 2.0
    %v730 = vmul.f32 %v692, 2.0
    %v731 = vmul.f32 %v694, 2.0
    %v732 = vmul.f32 %v698, 2.0
    %v733 = vmul.f32 %v700, 2.0
    %v734 = vmul.f32 %v704, 2.0
    %v735 = vmul.f32 %v706, 2.0
    %v736 = vmul.f32 %v710, 2.0
    %v737 = vmul.f32 %v712, 2.0
    %v738 = vmul.f32 %v716, 2.0
    %v739 = vmul.f32 %v718, 2.0
    %v740 = vmul.f32 %v722, 2.0
    %v741 = vmul.f32 %v724, 2.0
    %v743 = vlaneseq
    %v744 = vshrl.u32 %v743, 7
    %v745 = vsub.s32 0, %v744
    %v746 = vrot.slane %v612, %v745
    %v747 = vlaneseq
    %v748 = vshrl.u32 %v747, 7
    %v749 = vsub.s32 1, %v748
    %v750 = vrot.slane %v612, %v749
    %v753 = vsub.f32 %v746, %v726
    %v754 = vsub.f32 %v750, %v727
    %v755 = vsub.f32 %v746, %v728
    %v756 = vsub.f32 %v750, %v729
    %v757 = vsub.f32 %v746, %v730
    %v758 = vsub.f32 %v750, %v731
    %v759 = vsub.f32 %v746, %v732
    %v760 = vsub.f32 %v750, %v733
    %v761 = vsub.f32 %v746, %v734
    %v762 = vsub.f32 %v750, %v735
    %v763 = vsub.f32 %v746, %v736
    %v764 = vsub.f32 %v750, %v737
    %v765 = vsub.f32 %v746, %v738
    %v766 = vsub.f32 %v750, %v739
    %v767 = vsub.f32 %v746, %v740
    %v768 = vsub.f32 %v750, %v741
    %vm769 = vcmp.le.f32.partialorder %v753, %v754
    %v770 = vsel %vm769, %v753, %v754
    %v771 = vsel %vm769, %v293, %v294
    %772 = vmin.index.xlane.f32.xlu0 %v770
    %v773 = vpop.xlane.xlu0 %772
    %774 = vset.pattern.permute.xlu0 %v773
    %775 = vperm.xlu0 %774, %v771
    %v776 = vpop.permute.xlu0 %775
    %vm777 = vcmp.le.f32.partialorder %v755, %v756
    %v778 = vsel %vm777, %v755, %v756
    %v779 = vsel %vm777, %v293, %v294
    %780 = vmin.index.xlane.f32.xlu0 %v778
    %v781 = vpop.xlane.xlu0 %780
    %782 = vset.pattern.permute.xlu0 %v781
    %783 = vperm.xlu0 %782, %v779
    %v784 = vpop.permute.xlu0 %783
    %vm785 = vcmp.le.f32.partialorder %v757, %v758
    %v786 = vsel %vm785, %v757, %v758
    %v787 = vsel %vm785, %v293, %v294
    %788 = vmin.index.xlane.f32.xlu0 %v786
    %v789 = vpop.xlane.xlu0 %788
    %790 = vset.pattern.permute.xlu0 %v789
    %791 = vperm.xlu0 %790, %v787
    %v792 = vpop.permute.xlu0 %791
    %vm793 = vcmp.le.f32.partialorder %v759, %v760
    %v794 = vsel %vm793, %v759, %v760
    %v795 = vsel %vm793, %v293, %v294
    %796 = vmin.index.xlane.f32.xlu0 %v794
    %v797 = vpop.xlane.xlu0 %796
    %798 = vset.pattern.permute.xlu0 %v797
    %799 = vperm.xlu0 %798, %v795
    %v800 = vpop.permute.xlu0 %799
    %vm801 = vcmp.le.f32.partialorder %v761, %v762
    %v802 = vsel %vm801, %v761, %v762
    %v803 = vsel %vm801, %v293, %v294
    %804 = vmin.index.xlane.f32.xlu0 %v802
    %v805 = vpop.xlane.xlu0 %804
    %806 = vset.pattern.permute.xlu0 %v805
    %807 = vperm.xlu0 %806, %v803
    %v808 = vpop.permute.xlu0 %807
    %vm809 = vcmp.le.f32.partialorder %v763, %v764
    %v810 = vsel %vm809, %v763, %v764
    %v811 = vsel %vm809, %v293, %v294
    %812 = vmin.index.xlane.f32.xlu0 %v810
    %v813 = vpop.xlane.xlu0 %812
    %814 = vset.pattern.permute.xlu0 %v813
    %815 = vperm.xlu0 %814, %v811
    %v816 = vpop.permute.xlu0 %815
    %vm817 = vcmp.le.f32.partialorder %v765, %v766
    %v818 = vsel %vm817, %v765, %v766
    %v819 = vsel %vm817, %v293, %v294
    %820 = vmin.index.xlane.f32.xlu0 %v818
    %v821 = vpop.xlane.xlu0 %820
    %822 = vset.pattern.permute.xlu0 %v821
    %823 = vperm.xlu0 %822, %v819
    %v824 = vpop.permute.xlu0 %823
    %vm825 = vcmp.le.f32.partialorder %v767, %v768
    %v826 = vsel %vm825, %v767, %v768
    %v827 = vsel %vm825, %v293, %v294
    %828 = vmin.index.xlane.f32.xlu0 %v826
    %v829 = vpop.xlane.xlu0 %828
    %830 = vset.pattern.permute.xlu0 %v829
    %831 = vperm.xlu0 %830, %v827
    %v832 = vpop.permute.xlu0 %831
    %vm833 = vcmp.eq.s32.totalorder %v776, %v293
    %vm834 = vcmp.eq.s32.totalorder %v776, %v294
    %vm835 = vcmp.eq.s32.totalorder %v784, %v293
    %vm836 = vcmp.eq.s32.totalorder %v784, %v294
    %vm837 = vcmp.eq.s32.totalorder %v792, %v293
    %vm838 = vcmp.eq.s32.totalorder %v792, %v294
    %vm839 = vcmp.eq.s32.totalorder %v800, %v293
    %vm840 = vcmp.eq.s32.totalorder %v800, %v294
    %vm841 = vcmp.eq.s32.totalorder %v808, %v293
    %vm842 = vcmp.eq.s32.totalorder %v808, %v294
    %vm843 = vcmp.eq.s32.totalorder %v816, %v293
    %vm844 = vcmp.eq.s32.totalorder %v816, %v294
    %vm845 = vcmp.eq.s32.totalorder %v824, %v293
    %vm846 = vcmp.eq.s32.totalorder %v824, %v294
    %vm847 = vcmp.eq.s32.totalorder %v832, %v293
    %vm848 = vcmp.eq.s32.totalorder %v832, %v294
    %v849 = vsel %vm833, 1, 0
    %v850 = vsel %vm834, 1, 0
    %v851 = vsel %vm835, 1, 0
    %v852 = vsel %vm836, 1, 0
    %v853 = vsel %vm837, 1, 0
    %v854 = vsel %vm838, 1, 0
    %v855 = vsel %vm839, 1, 0
    %v856 = vsel %vm840, 1, 0
    %v857 = vsel %vm841, 1, 0
    %v858 = vsel %vm842, 1, 0
    %v859 = vsel %vm843, 1, 0
    %v860 = vsel %vm844, 1, 0
    %v861 = vsel %vm845, 1, 0
    %v862 = vsel %vm846, 1, 0
    %v863 = vsel %vm847, 1, 0
    %v864 = vsel %vm848, 1, 0
    %v865 = vcvt.s32.f32 %v849
    %v866 = vcvt.s32.f32 %v850
    %v867 = vcvt.s32.f32 %v851
    %v868 = vcvt.s32.f32 %v852
    %v869 = vcvt.s32.f32 %v853
    %v870 = vcvt.s32.f32 %v854
    %v871 = vcvt.s32.f32 %v855
    %v872 = vcvt.s32.f32 %v856
    %v873 = vcvt.s32.f32 %v857
    %v874 = vcvt.s32.f32 %v858
    %v875 = vcvt.s32.f32 %v859
    %v876 = vcvt.s32.f32 %v860
    %v877 = vcvt.s32.f32 %v861
    %v878 = vcvt.s32.f32 %v862
    %v879 = vcvt.s32.f32 %v863
    %v880 = vcvt.s32.f32 %v864
    %881 = vmatprep.subr.mxu0 0.0
    %882 = vmatpush1.msra.mxu0 %v579
    %883 = vmatprep.subr.mxu0 0.0
    %884 = vmatpush1.msra.mxu0 %v580
    %885 = vmatprep.subr.mxu0 0.0
    %886 = vmatpush1.msra.mxu0 %v581
    %887 = vmatprep.subr.mxu0 0.0
    %888 = vmatpush1.msra.mxu0 %v582
    %889 = vmatprep.subr.mxu0 0.0
    %890 = vmatpush1.msra.mxu0 %v583
    %891 = vmatprep.subr.mxu0 0.0
    %892 = vmatpush1.msra.mxu0 %v584
    %893 = vmatprep.subr.mxu0 0.0
    %894 = vmatpush1.msra.mxu0 %v585
    %895 = vmatprep.subr.mxu0 0.0
    %896 = vmatpush1.msra.mxu0 %v586
    %897 = vmatprep.subr.mxu0 0.0
    %898 = vmatpush1.msra.mxu0 %v587
    %899 = vmatprep.subr.mxu0 0.0
    %900 = vmatpush1.msra.mxu0 %v588
    %901 = vmatprep.subr.mxu0 0.0
    %902 = vmatpush1.msra.mxu0 %v589
    %903 = vmatprep.subr.mxu0 0.0
    %904 = vmatpush1.msra.mxu0 %v590
    %905 = vmatprep.subr.mxu0 0.0
    %906 = vmatpush1.msra.mxu0 %v591
    %907 = vmatprep.subr.mxu0 0.0
    %908 = vmatpush1.msra.mxu0 %v592
    %909 = vmatprep.subr.mxu0 0.0
    %910 = vmatpush1.msra.mxu0 %v593
    %911 = vmatprep.subr.mxu0 0.0
    %912 = vmatpush1.msra.mxu0 %v594
    %913 = vmatprep.subr.mxu0 0.0
    %914 = vmatpush1.msra.mxu0 %v595
    %915 = vmatprep.subr.mxu0 0.0
    %916 = vmatpush1.msra.mxu0 %v596
    %917 = vmatprep.subr.mxu0 0.0
    %918 = vmatpush1.msra.mxu0 %v597
    %919 = vmatprep.subr.mxu0 0.0
    %920 = vmatpush1.msra.mxu0 %v598
    %921 = vmatprep.subr.mxu0 0.0
    %922 = vmatpush1.msra.mxu0 %v599
    %923 = vmatprep.subr.mxu0 0.0
    %924 = vmatpush1.msra.mxu0 %v600
    %925 = vmatprep.subr.mxu0 0.0
    %926 = vmatpush1.msra.mxu0 %v601
    %927 = vmatprep.subr.mxu0 0.0
    %928 = vmatpush1.msra.mxu0 %v602
    %929 = vmatprep.subr.mxu0 0.0
    %930 = vmatpush1.msra.mxu0 %v603
    %931 = vmatprep.subr.mxu0 0.0
    %932 = vmatpush1.msra.mxu0 %v604
    %933 = vmatprep.subr.mxu0 0.0
    %934 = vmatpush1.msra.mxu0 %v605
    %935 = vmatprep.subr.mxu0 0.0
    %936 = vmatpush1.msra.mxu0 %v606
    %937 = vmatprep.subr.mxu0 0.0
    %938 = vmatpush1.msra.mxu0 %v607
    %939 = vmatprep.subr.mxu0 0.0
    %940 = vmatpush1.msra.mxu0 %v608
    %941 = vmatprep.subr.mxu0 0.0
    %942 = vmatpush1.msra.mxu0 %v609
    %943 = vmatprep.subr.mxu0 0.0
    %944 = vmatpush1.msra.mxu0 %v610
    %945 = vmatprep.mubr.f32.mxu0 %v866
    %946 = vmatmul.mubr.f32.gmra.mrb[0].mxu0 %v865
    %v947 = vpop.f32.mrb[0].mxu0
    %v948 = vadd.f32 0.0, %v947
    %v949 = vpop.f32.mrb[0].mxu0
    %950 = vmatprep.mubr.f32.mxu0 %v868
    %951 = vmatmul.mubr.f32.gmra.mrb[0].mxu0 %v867
    %v952 = vpop.f32.mrb[0].mxu0
    %v953 = vadd.f32 0.0, %v952
    %v954 = vpop.f32.mrb[0].mxu0
    %955 = vmatprep.mubr.f32.mxu0 %v870
    %956 = vmatmul.mubr.f32.gmra.mrb[0].mxu0 %v869
    %v957 = vpop.f32.mrb[0].mxu0
    %v958 = vadd.f32 0.0, %v957
    %v959 = vpop.f32.mrb[0].mxu0
    %960 = vmatprep.mubr.f32.mxu0 %v872
    %961 = vmatmul.mubr.f32.gmra.mrb[0].mxu0 %v871
    %v962 = vpop.f32.mrb[0].mxu0
    %v963 = vadd.f32 0.0, %v962
    %v964 = vpop.f32.mrb[0].mxu0
    %965 = vmatprep.mubr.f32.mxu0 %v874
    %966 = vmatmul.mubr.f32.gmra.mrb[0].mxu0 %v873
    %v967 = vpop.f32.mrb[0].mxu0
    %v968 = vadd.f32 0.0, %v967
    %v969 = vpop.f32.mrb[0].mxu0
    %970 = vmatprep.mubr.f32.mxu0 %v876
    %971 = vmatmul.mubr.f32.gmra.mrb[0].mxu0 %v875
    %v972 = vpop.f32.mrb[0].mxu0
    %v973 = vadd.f32 0.0, %v972
    %v974 = vpop.f32.mrb[0].mxu0
    %975 = vmatprep.mubr.f32.mxu0 %v878
    %976 = vmatmul.mubr.f32.gmra.mrb[0].mxu0 %v877
    %v977 = vpop.f32.mrb[0].mxu0
    %v978 = vadd.f32 0.0, %v977
    %v979 = vpop.f32.mrb[0].mxu0
    %980 = vmatprep.mubr.f32.mxu0 %v880
    %981 = vmatmul.mubr.f32.gmra.mrb[0].mxu0 %v879
    %v982 = vpop.f32.mrb[0].mxu0
    %v983 = vadd.f32 0.0, %v982
    %v984 = vpop.f32.mrb[0].mxu0
    %985 = vdwg.mxu0
    %v986 = vsub.f32 %v512, %v948
    %v987 = vsub.f32 %v513, %v953
    %v988 = vsub.f32 %v514, %v958
    %v989 = vsub.f32 %v515, %v963
    %v990 = vsub.f32 %v516, %v968
    %v991 = vsub.f32 %v517, %v973
    %v992 = vsub.f32 %v518, %v978
    %v993 = vsub.f32 %v519, %v983
    %v994 = vmul.f32 %v986, %v986
    %v995 = vmul.f32 %v987, %v987
    %v996 = vmul.f32 %v988, %v988
    %v997 = vmul.f32 %v989, %v989
    %v998 = vmul.f32 %v990, %v990
    %v999 = vmul.f32 %v991, %v991
    %v1000 = vmul.f32 %v992, %v992
    %v1001 = vmul.f32 %v993, %v993
    %v1002 = vadd.f32 %v994, %v995
    %v1003 = vadd.f32 %v1002, %v996
    %v1004 = vadd.f32 %v1003, %v997
    %v1005 = vadd.f32 %v1004, %v998
    %v1006 = vadd.f32 %v1005, %v999
    %v1007 = vadd.f32 %v1006, %v1000
    %v1008 = vadd.f32 %v1007, %v1001
    %1009 = vadd.xlane.f32.xlu0 %v1008
    %v1010 = vpop.xlane.xlu0 %1009
    %v1011 = vrot.slane %v1010, 4
    %v1012 = vadd.f32 %v1010, %v1011
    %v1013 = vrot.slane %v1012, 2
    %v1014 = vadd.f32 %v1012, %v1013
    %v1015 = vrot.slane %v1014, 1
    %v1016 = vadd.f32 %v1014, %v1015
    %s1017 = vtos %v1016
    %v1018 = vstv %s1017
    %s1019 = scalar_lea.vmem [#allocation7], 512
    %v1020 = vld [vmem:[%s1019] sm:$0xff]
    %v1021 = vld [vmem:[%s1019 + $0x8] sm:$0xff]
    %v1022 = vld [vmem:[%s1019 + $0x10] sm:$0xff]
    %v1023 = vld [vmem:[%s1019 + $0x18] sm:$0xff]
    %v1024 = vld [vmem:[%s1019 + $0x20] sm:$0xff]
    %v1025 = vld [vmem:[%s1019 + $0x28] sm:$0xff]
    %v1026 = vld [vmem:[%s1019 + $0x30] sm:$0xff]
    %v1027 = vld [vmem:[%s1019 + $0x38] sm:$0xff]
    %v1028 = vld [vmem:[%s1019 + $0x40] sm:$0xff]
    %v1029 = vld [vmem:[%s1019 + $0x48] sm:$0xff]
    %v1030 = vld [vmem:[%s1019 + $0x50] sm:$0xff]
    %v1031 = vld [vmem:[%s1019 + $0x58] sm:$0xff]
    %v1032 = vld [vmem:[%s1019 + $0x60] sm:$0xff]
    %v1033 = vld [vmem:[%s1019 + $0x68] sm:$0xff]
    %v1034 = vld [vmem:[%s1019 + $0x70] sm:$0xff]
    %v1035 = vld [vmem:[%s1019 + $0x78] sm:$0xff]
    %v1036 = vld [vmem:[%s1019 + $0x80] sm:$0xff]
    %v1037 = vld [vmem:[%s1019 + $0x88] sm:$0xff]
    %v1038 = vld [vmem:[%s1019 + $0x90] sm:$0xff]
    %v1039 = vld [vmem:[%s1019 + $0x98] sm:$0xff]
    %v1040 = vld [vmem:[%s1019 + $0xa0] sm:$0xff]
    %v1041 = vld [vmem:[%s1019 + $0xa8] sm:$0xff]
    %v1042 = vld [vmem:[%s1019 + $0xb0] sm:$0xff]
    %v1043 = vld [vmem:[%s1019 + $0xb8] sm:$0xff]
    %v1044 = vld [vmem:[%s1019 + $0xc0] sm:$0xff]
    %v1045 = vld [vmem:[%s1019 + $0xc8] sm:$0xff]
    %v1046 = vld [vmem:[%s1019 + $0xd0] sm:$0xff]
    %v1047 = vld [vmem:[%s1019 + $0xd8] sm:$0xff]
    %v1048 = vld [vmem:[%s1019 + $0xe0] sm:$0xff]
    %v1049 = vld [vmem:[%s1019 + $0xe8] sm:$0xff]
    %v1050 = vld [vmem:[%s1019 + $0xf0] sm:$0xff]
    %v1051 = vld [vmem:[%s1019 + $0xf8] sm:$0xff]
    %s1052 = scalar_lea.vmem [#allocation5], 512
    %v1053 = vld [vmem:[%s1052] sm:$0xff]
    %v1054 = vld [vmem:[%s1052 + $0x8] sm:$0xff]
    %v1055 = vld [vmem:[%s1052 + $0x10] sm:$0xff]
    %v1056 = vld [vmem:[%s1052 + $0x18] sm:$0xff]
    %v1057 = vld [vmem:[%s1052 + $0x20] sm:$0xff]
    %v1058 = vld [vmem:[%s1052 + $0x28] sm:$0xff]
    %v1059 = vld [vmem:[%s1052 + $0x30] sm:$0xff]
    %v1060 = vld [vmem:[%s1052 + $0x38] sm:$0xff]
    %v1061 = vld [vmem:[%s1052 + $0x40] sm:$0xff]
    %v1062 = vld [vmem:[%s1052 + $0x48] sm:$0xff]
    %v1063 = vld [vmem:[%s1052 + $0x50] sm:$0xff]
    %v1064 = vld [vmem:[%s1052 + $0x58] sm:$0xff]
    %v1065 = vld [vmem:[%s1052 + $0x60] sm:$0xff]
    %v1066 = vld [vmem:[%s1052 + $0x68] sm:$0xff]
    %v1067 = vld [vmem:[%s1052 + $0x70] sm:$0xff]
    %v1068 = vld [vmem:[%s1052 + $0x78] sm:$0xff]
    %v1069 = vld [vmem:[%s1052 + $0x80] sm:$0xff]
    %v1070 = vld [vmem:[%s1052 + $0x88] sm:$0xff]
    %v1071 = vld [vmem:[%s1052 + $0x90] sm:$0xff]
    %v1072 = vld [vmem:[%s1052 + $0x98] sm:$0xff]
    %v1073 = vld [vmem:[%s1052 + $0xa0] sm:$0xff]
    %v1074 = vld [vmem:[%s1052 + $0xa8] sm:$0xff]
    %v1075 = vld [vmem:[%s1052 + $0xb0] sm:$0xff]
    %v1076 = vld [vmem:[%s1052 + $0xb8] sm:$0xff]
    %v1077 = vld [vmem:[%s1052 + $0xc0] sm:$0xff]
    %v1078 = vld [vmem:[%s1052 + $0xc8] sm:$0xff]
    %v1079 = vld [vmem:[%s1052 + $0xd0] sm:$0xff]
    %v1080 = vld [vmem:[%s1052 + $0xd8] sm:$0xff]
    %v1081 = vld [vmem:[%s1052 + $0xe0] sm:$0xff]
    %v1082 = vld [vmem:[%s1052 + $0xe8] sm:$0xff]
    %v1083 = vld [vmem:[%s1052 + $0xf0] sm:$0xff]
    %v1084 = vld [vmem:[%s1052 + $0xf8] sm:$0xff]
    %s1085 = scalar_lea.vmem %s3, 4
    %v1086 = vld [vmem:[%s1085] sm:$0x3]
    %1087 = vmatprep.subr.mxu0 %v1021
    %1088 = vmatpush1.msra.mxu0 %v1020
    %1089 = vmatprep.subr.mxu0 %v1023
    %1090 = vmatpush1.msra.mxu0 %v1022
    %1091 = vmatprep.subr.mxu0 %v1025
    %1092 = vmatpush1.msra.mxu0 %v1024
    %1093 = vmatprep.subr.mxu0 %v1027
    %1094 = vmatpush1.msra.mxu0 %v1026
    %1095 = vmatprep.subr.mxu0 %v1029
    %1096 = vmatpush1.msra.mxu0 %v1028
    %1097 = vmatprep.subr.mxu0 %v1031
    %1098 = vmatpush1.msra.mxu0 %v1030
    %1099 = vmatprep.subr.mxu0 %v1033
    %1100 = vmatpush1.msra.mxu0 %v1032
    %1101 = vmatprep.subr.mxu0 %v1035
    %1102 = vmatpush1.msra.mxu0 %v1034
    %1103 = vmatprep.subr.mxu0 %v1037
    %1104 = vmatpush1.msra.mxu0 %v1036
    %1105 = vmatprep.subr.mxu0 %v1039
    %1106 = vmatpush1.msra.mxu0 %v1038
    %1107 = vmatprep.subr.mxu0 %v1041
    %1108 = vmatpush1.msra.mxu0 %v1040
    %1109 = vmatprep.subr.mxu0 %v1043
    %1110 = vmatpush1.msra.mxu0 %v1042
    %1111 = vmatprep.subr.mxu0 %v1045
    %1112 = vmatpush1.msra.mxu0 %v1044
    %1113 = vmatprep.subr.mxu0 %v1047
    %1114 = vmatpush1.msra.mxu0 %v1046
    %1115 = vmatprep.subr.mxu0 %v1049
    %1116 = vmatpush1.msra.mxu0 %v1048
    %1117 = vmatprep.subr.mxu0 %v1051
    %1118 = vmatpush1.msra.mxu0 %v1050
    %1119 = vmatprep.subr.mxu0 0.0
    %1120 = vmatpush1.msra.mxu0 0.0
    %1121 = vmatprep.subr.mxu0 0.0
    %1122 = vmatpush1.msra.mxu0 0.0
    %1123 = vmatprep.subr.mxu0 0.0
    %1124 = vmatpush1.msra.mxu0 0.0
    %1125 = vmatprep.subr.mxu0 0.0
    %1126 = vmatpush1.msra.mxu0 0.0
    %1127 = vmatprep.subr.mxu0 0.0
    %1128 = vmatpush1.msra.mxu0 0.0
    %1129 = vmatprep.subr.mxu0 0.0
    %1130 = vmatpush1.msra.mxu0 0.0
    %1131 = vmatprep.subr.mxu0 0.0
    %1132 = vmatpush1.msra.mxu0 0.0
    %1133 = vmatprep.subr.mxu0 0.0
    %1134 = vmatpush1.msra.mxu0 0.0
    %1135 = vmatprep.subr.mxu0 0.0
    %1136 = vmatpush1.msra.mxu0 0.0
    %1137 = vmatprep.subr.mxu0 0.0
    %1138 = vmatpush1.msra.mxu0 0.0
    %1139 = vmatprep.subr.mxu0 0.0
    %1140 = vmatpush1.msra.mxu0 0.0
    %1141 = vmatprep.subr.mxu0 0.0
    %1142 = vmatpush1.msra.mxu0 0.0
    %1143 = vmatprep.subr.mxu0 0.0
    %1144 = vmatpush1.msra.mxu0 0.0
    %1145 = vmatprep.subr.mxu0 0.0
    %1146 = vmatpush1.msra.mxu0 0.0
    %1147 = vmatprep.subr.mxu0 0.0
    %1148 = vmatpush1.msra.mxu0 0.0
    %1149 = vmatprep.subr.mxu0 0.0
    %1150 = vmatpush1.msra.mxu0 0.0
    %1151 = vmatprep.mubr.f32.mxu0 0.0
    %1152 = vmatmul.mubr.f32.gmra.mrb[0].mxu0 %v986
    %v1153 = vpop.f32.mrb[0].mxu0
    %v1154 = vadd.f32 0.0, %v1153
    %v1155 = vpop.f32.mrb[0].mxu0
    %v1156 = vadd.f32 0.0, %v1155
    %1157 = vmatprep.mubr.f32.mxu0 0.0
    %1158 = vmatmul.mubr.f32.gmra.mrb[0].mxu0 %v987
    %v1159 = vpop.f32.mrb[0].mxu0
    %v1160 = vadd.f32 0.0, %v1159
    %v1161 = vpop.f32.mrb[0].mxu0
    %v1162 = vadd.f32 0.0, %v1161
    %1163 = vmatprep.mubr.f32.mxu0 0.0
    %1164 = vmatmul.mubr.f32.gmra.mrb[0].mxu0 %v988
    %v1165 = vpop.f32.mrb[0].mxu0
    %v1166 = vadd.f32 0.0, %v1165
    %v1167 = vpop.f32.mrb[0].mxu0
    %v1168 = vadd.f32 0.0, %v1167
    %1169 = vmatprep.mubr.f32.mxu0 0.0
    %1170 = vmatmul.mubr.f32.gmra.mrb[0].mxu0 %v989
    %v1171 = vpop.f32.mrb[0].mxu0
    %v1172 = vadd.f32 0.0, %v1171
    %v1173 = vpop.f32.mrb[0].mxu0
    %v1174 = vadd.f32 0.0, %v1173
    %1175 = vmatprep.mubr.f32.mxu0 0.0
    %1176 = vmatmul.mubr.f32.gmra.mrb[0].mxu0 %v990
    %v1177 = vpop.f32.mrb[0].mxu0
    %v1178 = vadd.f32 0.0, %v1177
    %v1179 = vpop.f32.mrb[0].mxu0
    %v1180 = vadd.f32 0.0, %v1179
    %1181 = vmatprep.mubr.f32.mxu0 0.0
    %1182 = vmatmul.mubr.f32.gmra.mrb[0].mxu0 %v991
    %v1183 = vpop.f32.mrb[0].mxu0
    %v1184 = vadd.f32 0.0, %v1183
    %v1185 = vpop.f32.mrb[0].mxu0
    %v1186 = vadd.f32 0.0, %v1185
    %1187 = vmatprep.mubr.f32.mxu0 0.0
    %1188 = vmatmul.mubr.f32.gmra.mrb[0].mxu0 %v992
    %v1189 = vpop.f32.mrb[0].mxu0
    %v1190 = vadd.f32 0.0, %v1189
    %v1191 = vpop.f32.mrb[0].mxu0
    %v1192 = vadd.f32 0.0, %v1191
    %1193 = vmatprep.mubr.f32.mxu0 0.0
    %1194 = vmatmul.mubr.f32.gmra.mrb[0].mxu0 %v993
    %v1195 = vpop.f32.mrb[0].mxu0
    %v1196 = vadd.f32 0.0, %v1195
    %v1197 = vpop.f32.mrb[0].mxu0
    %v1198 = vadd.f32 0.0, %v1197
    %1199 = vdwg.mxu0
    %v1200 = vmul.f32 %v1154, 2.0
    %v1201 = vmul.f32 %v1156, 2.0
    %v1202 = vmul.f32 %v1160, 2.0
    %v1203 = vmul.f32 %v1162, 2.0
    %v1204 = vmul.f32 %v1166, 2.0
    %v1205 = vmul.f32 %v1168, 2.0
    %v1206 = vmul.f32 %v1172, 2.0
    %v1207 = vmul.f32 %v1174, 2.0
    %v1208 = vmul.f32 %v1178, 2.0
    %v1209 = vmul.f32 %v1180, 2.0
    %v1210 = vmul.f32 %v1184, 2.0
    %v1211 = vmul.f32 %v1186, 2.0
    %v1212 = vmul.f32 %v1190, 2.0
    %v1213 = vmul.f32 %v1192, 2.0
    %v1214 = vmul.f32 %v1196, 2.0
    %v1215 = vmul.f32 %v1198, 2.0
    %v1217 = vlaneseq
    %v1218 = vshrl.u32 %v1217, 7
    %v1219 = vsub.s32 0, %v1218
    %v1220 = vrot.slane %v1086, %v1219
    %v1221 = vlaneseq
    %v1222 = vshrl.u32 %v1221, 7
    %v1223 = vsub.s32 1, %v1222
    %v1224 = vrot.slane %v1086, %v1223
    %v1227 = vsub.f32 %v1220, %v1200
    %v1228 = vsub.f32 %v1224, %v1201
    %v1229 = vsub.f32 %v1220, %v1202
    %v1230 = vsub.f32 %v1224, %v1203
    %v1231 = vsub.f32 %v1220, %v1204
    %v1232 = vsub.f32 %v1224, %v1205
    %v1233 = vsub.f32 %v1220, %v1206
    %v1234 = vsub.f32 %v1224, %v1207
    %v1235 = vsub.f32 %v1220, %v1208
    %v1236 = vsub.f32 %v1224, %v1209
    %v1237 = vsub.f32 %v1220, %v1210
    %v1238 = vsub.f32 %v1224, %v1211
    %v1239 = vsub.f32 %v1220, %v1212
    %v1240 = vsub.f32 %v1224, %v1213
    %v1241 = vsub.f32 %v1220, %v1214
    %v1242 = vsub.f32 %v1224, %v1215
    %vm1243 = vcmp.le.f32.partialorder %v1227, %v1228
    %v1244 = vsel %vm1243, %v1227, %v1228
    %v1245 = vsel %vm1243, %v293, %v294
    %1246 = vmin.index.xlane.f32.xlu0 %v1244
    %v1247 = vpop.xlane.xlu0 %1246
    %1248 = vset.pattern.permute.xlu0 %v1247
    %1249 = vperm.xlu0 %1248, %v1245
    %v1250 = vpop.permute.xlu0 %1249
    %vm1251 = vcmp.le.f32.partialorder %v1229, %v1230
    %v1252 = vsel %vm1251, %v1229, %v1230
    %v1253 = vsel %vm1251, %v293, %v294
    %1254 = vmin.index.xlane.f32.xlu0 %v1252
    %v1255 = vpop.xlane.xlu0 %1254
    %1256 = vset.pattern.permute.xlu0 %v1255
    %1257 = vperm.xlu0 %1256, %v1253
    %v1258 = vpop.permute.xlu0 %1257
    %vm1259 = vcmp.le.f32.partialorder %v1231, %v1232
    %v1260 = vsel %vm1259, %v1231, %v1232
    %v1261 = vsel %vm1259, %v293, %v294
    %1262 = vmin.index.xlane.f32.xlu0 %v1260
    %v1263 = vpop.xlane.xlu0 %1262
    %1264 = vset.pattern.permute.xlu0 %v1263
    %1265 = vperm.xlu0 %1264, %v1261
    %v1266 = vpop.permute.xlu0 %1265
    %vm1267 = vcmp.le.f32.partialorder %v1233, %v1234
    %v1268 = vsel %vm1267, %v1233, %v1234
    %v1269 = vsel %vm1267, %v293, %v294
    %1270 = vmin.index.xlane.f32.xlu0 %v1268
    %v1271 = vpop.xlane.xlu0 %1270
    %1272 = vset.pattern.permute.xlu0 %v1271
    %1273 = vperm.xlu0 %1272, %v1269
    %v1274 = vpop.permute.xlu0 %1273
    %vm1275 = vcmp.le.f32.partialorder %v1235, %v1236
    %v1276 = vsel %vm1275, %v1235, %v1236
    %v1277 = vsel %vm1275, %v293, %v294
    %1278 = vmin.index.xlane.f32.xlu0 %v1276
    %v1279 = vpop.xlane.xlu0 %1278
    %1280 = vset.pattern.permute.xlu0 %v1279
    %1281 = vperm.xlu0 %1280, %v1277
    %v1282 = vpop.permute.xlu0 %1281
    %vm1283 = vcmp.le.f32.partialorder %v1237, %v1238
    %v1284 = vsel %vm1283, %v1237, %v1238
    %v1285 = vsel %vm1283, %v293, %v294
    %1286 = vmin.index.xlane.f32.xlu0 %v1284
    %v1287 = vpop.xlane.xlu0 %1286
    %1288 = vset.pattern.permute.xlu0 %v1287
    %1289 = vperm.xlu0 %1288, %v1285
    %v1290 = vpop.permute.xlu0 %1289
    %vm1291 = vcmp.le.f32.partialorder %v1239, %v1240
    %v1292 = vsel %vm1291, %v1239, %v1240
    %v1293 = vsel %vm1291, %v293, %v294
    %1294 = vmin.index.xlane.f32.xlu0 %v1292
    %v1295 = vpop.xlane.xlu0 %1294
    %1296 = vset.pattern.permute.xlu0 %v1295
    %1297 = vperm.xlu0 %1296, %v1293
    %v1298 = vpop.permute.xlu0 %1297
    %vm1299 = vcmp.le.f32.partialorder %v1241, %v1242
    %v1300 = vsel %vm1299, %v1241, %v1242
    %v1301 = vsel %vm1299, %v293, %v294
    %1302 = vmin.index.xlane.f32.xlu0 %v1300
    %v1303 = vpop.xlane.xlu0 %1302
    %1304 = vset.pattern.permute.xlu0 %v1303
    %1305 = vperm.xlu0 %1304, %v1301
    %v1306 = vpop.permute.xlu0 %1305
    %vm1307 = vcmp.eq.s32.totalorder %v1250, %v293
    %vm1308 = vcmp.eq.s32.totalorder %v1250, %v294
    %vm1309 = vcmp.eq.s32.totalorder %v1258, %v293
    %vm1310 = vcmp.eq.s32.totalorder %v1258, %v294
    %vm1311 = vcmp.eq.s32.totalorder %v1266, %v293
    %vm1312 = vcmp.eq.s32.totalorder %v1266, %v294
    %vm1313 = vcmp.eq.s32.totalorder %v1274, %v293
    %vm1314 = vcmp.eq.s32.totalorder %v1274, %v294
    %vm1315 = vcmp.eq.s32.totalorder %v1282, %v293
    %vm1316 = vcmp.eq.s32.totalorder %v1282, %v294
    %vm1317 = vcmp.eq.s32.totalorder %v1290, %v293
    %vm1318 = vcmp.eq.s32.totalorder %v1290, %v294
    %vm1319 = vcmp.eq.s32.totalorder %v1298, %v293
    %vm1320 = vcmp.eq.s32.totalorder %v1298, %v294
    %vm1321 = vcmp.eq.s32.totalorder %v1306, %v293
    %vm1322 = vcmp.eq.s32.totalorder %v1306, %v294
    %v1323 = vsel %vm1307, 1, 0
    %v1324 = vsel %vm1308, 1, 0
    %v1325 = vsel %vm1309, 1, 0
    %v1326 = vsel %vm1310, 1, 0
    %v1327 = vsel %vm1311, 1, 0
    %v1328 = vsel %vm1312, 1, 0
    %v1329 = vsel %vm1313, 1, 0
    %v1330 = vsel %vm1314, 1, 0
    %v1331 = vsel %vm1315, 1, 0
    %v1332 = vsel %vm1316, 1, 0
    %v1333 = vsel %vm1317, 1, 0
    %v1334 = vsel %vm1318, 1, 0
    %v1335 = vsel %vm1319, 1, 0
    %v1336 = vsel %vm1320, 1, 0
    %v1337 = vsel %vm1321, 1, 0
    %v1338 = vsel %vm1322, 1, 0
    %v1339 = vcvt.s32.f32 %v1323
    %v1340 = vcvt.s32.f32 %v1324
    %v1341 = vcvt.s32.f32 %v1325
    %v1342 = vcvt.s32.f32 %v1326
    %v1343 = vcvt.s32.f32 %v1327
    %v1344 = vcvt.s32.f32 %v1328
    %v1345 = vcvt.s32.f32 %v1329
    %v1346 = vcvt.s32.f32 %v1330
    %v1347 = vcvt.s32.f32 %v1331
    %v1348 = vcvt.s32.f32 %v1332
    %v1349 = vcvt.s32.f32 %v1333
    %v1350 = vcvt.s32.f32 %v1334
    %v1351 = vcvt.s32.f32 %v1335
    %v1352 = vcvt.s32.f32 %v1336
    %v1353 = vcvt.s32.f32 %v1337
    %v1354 = vcvt.s32.f32 %v1338
    %1355 = vmatprep.subr.mxu0 0.0
    %1356 = vmatpush1.msra.mxu0 %v1053
    %1357 = vmatprep.subr.mxu0 0.0
    %1358 = vmatpush1.msra.mxu0 %v1054
    %1359 = vmatprep.subr.mxu0 0.0
    %1360 = vmatpush1.msra.mxu0 %v1055
    %1361 = vmatprep.subr.mxu0 0.0
    %1362 = vmatpush1.msra.mxu0 %v1056
    %1363 = vmatprep.subr.mxu0 0.0
    %1364 = vmatpush1.msra.mxu0 %v1057
    %1365 = vmatprep.subr.mxu0 0.0
    %1366 = vmatpush1.msra.mxu0 %v1058
    %1367 = vmatprep.subr.mxu0 0.0
    %1368 = vmatpush1.msra.mxu0 %v1059
    %1369 = vmatprep.subr.mxu0 0.0
    %1370 = vmatpush1.msra.mxu0 %v1060
    %1371 = vmatprep.subr.mxu0 0.0
    %1372 = vmatpush1.msra.mxu0 %v1061
    %1373 = vmatprep.subr.mxu0 0.0
    %1374 = vmatpush1.msra.mxu0 %v1062
    %1375 = vmatprep.subr.mxu0 0.0
    %1376 = vmatpush1.msra.mxu0 %v1063
    %1377 = vmatprep.subr.mxu0 0.0
    %1378 = vmatpush1.msra.mxu0 %v1064
    %1379 = vmatprep.subr.mxu0 0.0
    %1380 = vmatpush1.msra.mxu0 %v1065
    %1381 = vmatprep.subr.mxu0 0.0
    %1382 = vmatpush1.msra.mxu0 %v1066
    %1383 = vmatprep.subr.mxu0 0.0
    %1384 = vmatpush1.msra.mxu0 %v1067
    %1385 = vmatprep.subr.mxu0 0.0
    %1386 = vmatpush1.msra.mxu0 %v1068
    %1387 = vmatprep.subr.mxu0 0.0
    %1388 = vmatpush1.msra.mxu0 %v1069
    %1389 = vmatprep.subr.mxu0 0.0
    %1390 = vmatpush1.msra.mxu0 %v1070
    %1391 = vmatprep.subr.mxu0 0.0
    %1392 = vmatpush1.msra.mxu0 %v1071
    %1393 = vmatprep.subr.mxu0 0.0
    %1394 = vmatpush1.msra.mxu0 %v1072
    %1395 = vmatprep.subr.mxu0 0.0
    %1396 = vmatpush1.msra.mxu0 %v1073
    %1397 = vmatprep.subr.mxu0 0.0
    %1398 = vmatpush1.msra.mxu0 %v1074
    %1399 = vmatprep.subr.mxu0 0.0
    %1400 = vmatpush1.msra.mxu0 %v1075
    %1401 = vmatprep.subr.mxu0 0.0
    %1402 = vmatpush1.msra.mxu0 %v1076
    %1403 = vmatprep.subr.mxu0 0.0
    %1404 = vmatpush1.msra.mxu0 %v1077
    %1405 = vmatprep.subr.mxu0 0.0
    %1406 = vmatpush1.msra.mxu0 %v1078
    %1407 = vmatprep.subr.mxu0 0.0
    %1408 = vmatpush1.msra.mxu0 %v1079
    %1409 = vmatprep.subr.mxu0 0.0
    %1410 = vmatpush1.msra.mxu0 %v1080
    %1411 = vmatprep.subr.mxu0 0.0
    %1412 = vmatpush1.msra.mxu0 %v1081
    %1413 = vmatprep.subr.mxu0 0.0
    %1414 = vmatpush1.msra.mxu0 %v1082
    %1415 = vmatprep.subr.mxu0 0.0
    %1416 = vmatpush1.msra.mxu0 %v1083
    %1417 = vmatprep.subr.mxu0 0.0
    %1418 = vmatpush1.msra.mxu0 %v1084
    %1419 = vmatprep.mubr.f32.mxu0 %v1340
    %1420 = vmatmul.mubr.f32.gmra.mrb[0].mxu0 %v1339
    %v1421 = vpop.f32.mrb[0].mxu0
    %v1422 = vadd.f32 0.0, %v1421
    %v1423 = vpop.f32.mrb[0].mxu0
    %1424 = vmatprep.mubr.f32.mxu0 %v1342
    %1425 = vmatmul.mubr.f32.gmra.mrb[0].mxu0 %v1341
    %v1426 = vpop.f32.mrb[0].mxu0
    %v1427 = vadd.f32 0.0, %v1426
    %v1428 = vpop.f32.mrb[0].mxu0
    %1429 = vmatprep.mubr.f32.mxu0 %v1344
    %1430 = vmatmul.mubr.f32.gmra.mrb[0].mxu0 %v1343
    %v1431 = vpop.f32.mrb[0].mxu0
    %v1432 = vadd.f32 0.0, %v1431
    %v1433 = vpop.f32.mrb[0].mxu0
    %1434 = vmatprep.mubr.f32.mxu0 %v1346
    %1435 = vmatmul.mubr.f32.gmra.mrb[0].mxu0 %v1345
    %v1436 = vpop.f32.mrb[0].mxu0
    %v1437 = vadd.f32 0.0, %v1436
    %v1438 = vpop.f32.mrb[0].mxu0
    %1439 = vmatprep.mubr.f32.mxu0 %v1348
    %1440 = vmatmul.mubr.f32.gmra.mrb[0].mxu0 %v1347
    %v1441 = vpop.f32.mrb[0].mxu0
    %v1442 = vadd.f32 0.0, %v1441
    %v1443 = vpop.f32.mrb[0].mxu0
    %1444 = vmatprep.mubr.f32.mxu0 %v1350
    %1445 = vmatmul.mubr.f32.gmra.mrb[0].mxu0 %v1349
    %v1446 = vpop.f32.mrb[0].mxu0
    %v1447 = vadd.f32 0.0, %v1446
    %v1448 = vpop.f32.mrb[0].mxu0
    %1449 = vmatprep.mubr.f32.mxu0 %v1352
    %1450 = vmatmul.mubr.f32.gmra.mrb[0].mxu0 %v1351
    %v1451 = vpop.f32.mrb[0].mxu0
    %v1452 = vadd.f32 0.0, %v1451
    %v1453 = vpop.f32.mrb[0].mxu0
    %1454 = vmatprep.mubr.f32.mxu0 %v1354
    %1455 = vmatmul.mubr.f32.gmra.mrb[0].mxu0 %v1353
    %v1456 = vpop.f32.mrb[0].mxu0
    %v1457 = vadd.f32 0.0, %v1456
    %v1458 = vpop.f32.mrb[0].mxu0
    %1459 = vdwg.mxu0
    %v1460 = vsub.f32 %v986, %v1422
    %v1461 = vsub.f32 %v987, %v1427
    %v1462 = vsub.f32 %v988, %v1432
    %v1463 = vsub.f32 %v989, %v1437
    %v1464 = vsub.f32 %v990, %v1442
    %v1465 = vsub.f32 %v991, %v1447
    %v1466 = vsub.f32 %v992, %v1452
    %v1467 = vsub.f32 %v993, %v1457
    %v1468 = vmul.f32 %v1460, %v1460
    %v1469 = vmul.f32 %v1461, %v1461
    %v1470 = vmul.f32 %v1462, %v1462
    %v1471 = vmul.f32 %v1463, %v1463
    %v1472 = vmul.f32 %v1464, %v1464
    %v1473 = vmul.f32 %v1465, %v1465
    %v1474 = vmul.f32 %v1466, %v1466
    %v1475 = vmul.f32 %v1467, %v1467
    %v1476 = vadd.f32 %v1468, %v1469
    %v1477 = vadd.f32 %v1476, %v1470
    %v1478 = vadd.f32 %v1477, %v1471
    %v1479 = vadd.f32 %v1478, %v1472
    %v1480 = vadd.f32 %v1479, %v1473
    %v1481 = vadd.f32 %v1480, %v1474
    %v1482 = vadd.f32 %v1481, %v1475
    %1483 = vadd.xlane.f32.xlu0 %v1482
    %v1484 = vpop.xlane.xlu0 %1483
    %v1485 = vrot.slane %v1484, 4
    %v1486 = vadd.f32 %v1484, %v1485
    %v1487 = vrot.slane %v1486, 2
    %v1488 = vadd.f32 %v1486, %v1487
    %v1489 = vrot.slane %v1488, 1
    %v1490 = vadd.f32 %v1488, %v1489
    %s1491 = vtos %v1490
    %v1492 = vstv %s1491
    %s1493 = scalar_lea.vmem [#allocation7], 768
    %v1494 = vld [vmem:[%s1493] sm:$0xff]
    %v1495 = vld [vmem:[%s1493 + $0x8] sm:$0xff]
    %v1496 = vld [vmem:[%s1493 + $0x10] sm:$0xff]
    %v1497 = vld [vmem:[%s1493 + $0x18] sm:$0xff]
    %v1498 = vld [vmem:[%s1493 + $0x20] sm:$0xff]
    %v1499 = vld [vmem:[%s1493 + $0x28] sm:$0xff]
    %v1500 = vld [vmem:[%s1493 + $0x30] sm:$0xff]
    %v1501 = vld [vmem:[%s1493 + $0x38] sm:$0xff]
    %v1502 = vld [vmem:[%s1493 + $0x40] sm:$0xff]
    %v1503 = vld [vmem:[%s1493 + $0x48] sm:$0xff]
    %v1504 = vld [vmem:[%s1493 + $0x50] sm:$0xff]
    %v1505 = vld [vmem:[%s1493 + $0x58] sm:$0xff]
    %v1506 = vld [vmem:[%s1493 + $0x60] sm:$0xff]
    %v1507 = vld [vmem:[%s1493 + $0x68] sm:$0xff]
    %v1508 = vld [vmem:[%s1493 + $0x70] sm:$0xff]
    %v1509 = vld [vmem:[%s1493 + $0x78] sm:$0xff]
    %v1510 = vld [vmem:[%s1493 + $0x80] sm:$0xff]
    %v1511 = vld [vmem:[%s1493 + $0x88] sm:$0xff]
    %v1512 = vld [vmem:[%s1493 + $0x90] sm:$0xff]
    %v1513 = vld [vmem:[%s1493 + $0x98] sm:$0xff]
    %v1514 = vld [vmem:[%s1493 + $0xa0] sm:$0xff]
    %v1515 = vld [vmem:[%s1493 + $0xa8] sm:$0xff]
    %v1516 = vld [vmem:[%s1493 + $0xb0] sm:$0xff]
    %v1517 = vld [vmem:[%s1493 + $0xb8] sm:$0xff]
    %v1518 = vld [vmem:[%s1493 + $0xc0] sm:$0xff]
    %v1519 = vld [vmem:[%s1493 + $0xc8] sm:$0xff]
    %v1520 = vld [vmem:[%s1493 + $0xd0] sm:$0xff]
    %v1521 = vld [vmem:[%s1493 + $0xd8] sm:$0xff]
    %v1522 = vld [vmem:[%s1493 + $0xe0] sm:$0xff]
    %v1523 = vld [vmem:[%s1493 + $0xe8] sm:$0xff]
    %v1524 = vld [vmem:[%s1493 + $0xf0] sm:$0xff]
    %v1525 = vld [vmem:[%s1493 + $0xf8] sm:$0xff]
    %s1526 = scalar_lea.vmem [#allocation5], 768
    %v1527 = vld [vmem:[%s1526] sm:$0xff]
    %v1528 = vld [vmem:[%s1526 + $0x8] sm:$0xff]
    %v1529 = vld [vmem:[%s1526 + $0x10] sm:$0xff]
    %v1530 = vld [vmem:[%s1526 + $0x18] sm:$0xff]
    %v1531 = vld [vmem:[%s1526 + $0x20] sm:$0xff]
    %v1532 = vld [vmem:[%s1526 + $0x28] sm:$0xff]
    %v1533 = vld [vmem:[%s1526 + $0x30] sm:$0xff]
    %v1534 = vld [vmem:[%s1526 + $0x38] sm:$0xff]
    %v1535 = vld [vmem:[%s1526 + $0x40] sm:$0xff]
    %v1536 = vld [vmem:[%s1526 + $0x48] sm:$0xff]
    %v1537 = vld [vmem:[%s1526 + $0x50] sm:$0xff]
    %v1538 = vld [vmem:[%s1526 + $0x58] sm:$0xff]
    %v1539 = vld [vmem:[%s1526 + $0x60] sm:$0xff]
    %v1540 = vld [vmem:[%s1526 + $0x68] sm:$0xff]
    %v1541 = vld [vmem:[%s1526 + $0x70] sm:$0xff]
    %v1542 = vld [vmem:[%s1526 + $0x78] sm:$0xff]
    %v1543 = vld [vmem:[%s1526 + $0x80] sm:$0xff]
    %v1544 = vld [vmem:[%s1526 + $0x88] sm:$0xff]
    %v1545 = vld [vmem:[%s1526 + $0x90] sm:$0xff]
    %v1546 = vld [vmem:[%s1526 + $0x98] sm:$0xff]
    %v1547 = vld [vmem:[%s1526 + $0xa0] sm:$0xff]
    %v1548 = vld [vmem:[%s1526 + $0xa8] sm:$0xff]
    %v1549 = vld [vmem:[%s1526 + $0xb0] sm:$0xff]
    %v1550 = vld [vmem:[%s1526 + $0xb8] sm:$0xff]
    %v1551 = vld [vmem:[%s1526 + $0xc0] sm:$0xff]
    %v1552 = vld [vmem:[%s1526 + $0xc8] sm:$0xff]
    %v1553 = vld [vmem:[%s1526 + $0xd0] sm:$0xff]
    %v1554 = vld [vmem:[%s1526 + $0xd8] sm:$0xff]
    %v1555 = vld [vmem:[%s1526 + $0xe0] sm:$0xff]
    %v1556 = vld [vmem:[%s1526 + $0xe8] sm:$0xff]
    %v1557 = vld [vmem:[%s1526 + $0xf0] sm:$0xff]
    %v1558 = vld [vmem:[%s1526 + $0xf8] sm:$0xff]
    %s1559 = scalar_lea.vmem %s3, 6
    %v1560 = vld [vmem:[%s1559] sm:$0x3]
    %1561 = vmatprep.subr.mxu0 %v1495
    %1562 = vmatpush1.msra.mxu0 %v1494
    %1563 = vmatprep.subr.mxu0 %v1497
    %1564 = vmatpush1.msra.mxu0 %v1496
    %1565 = vmatprep.subr.mxu0 %v1499
    %1566 = vmatpush1.msra.mxu0 %v1498
    %1567 = vmatprep.subr.mxu0 %v1501
    %1568 = vmatpush1.msra.mxu0 %v1500
    %1569 = vmatprep.subr.mxu0 %v1503
    %1570 = vmatpush1.msra.mxu0 %v1502
    %1571 = vmatprep.subr.mxu0 %v1505
    %1572 = vmatpush1.msra.mxu0 %v1504
    %1573 = vmatprep.subr.mxu0 %v1507
    %1574 = vmatpush1.msra.mxu0 %v1506
    %1575 = vmatprep.subr.mxu0 %v1509
    %1576 = vmatpush1.msra.mxu0 %v1508
    %1577 = vmatprep.subr.mxu0 %v1511
    %1578 = vmatpush1.msra.mxu0 %v1510
    %1579 = vmatprep.subr.mxu0 %v1513
    %1580 = vmatpush1.msra.mxu0 %v1512
    %1581 = vmatprep.subr.mxu0 %v1515
    %1582 = vmatpush1.msra.mxu0 %v1514
    %1583 = vmatprep.subr.mxu0 %v1517
    %1584 = vmatpush1.msra.mxu0 %v1516
    %1585 = vmatprep.subr.mxu0 %v1519
    %1586 = vmatpush1.msra.mxu0 %v1518
    %1587 = vmatprep.subr.mxu0 %v1521
    %1588 = vmatpush1.msra.mxu0 %v1520
    %1589 = vmatprep.subr.mxu0 %v1523
    %1590 = vmatpush1.msra.mxu0 %v1522
    %1591 = vmatprep.subr.mxu0 %v1525
    %1592 = vmatpush1.msra.mxu0 %v1524
    %1593 = vmatprep.subr.mxu0 0.0
    %1594 = vmatpush1.msra.mxu0 0.0
    %1595 = vmatprep.subr.mxu0 0.0
    %1596 = vmatpush1.msra.mxu0 0.0
    %1597 = vmatprep.subr.mxu0 0.0
    %1598 = vmatpush1.msra.mxu0 0.0
    %1599 = vmatprep.subr.mxu0 0.0
    %1600 = vmatpush1.msra.mxu0 0.0
    %1601 = vmatprep.subr.mxu0 0.0
    %1602 = vmatpush1.msra.mxu0 0.0
    %1603 = vmatprep.subr.mxu0 0.0
    %1604 = vmatpush1.msra.mxu0 0.0
    %1605 = vmatprep.subr.mxu0 0.0
    %1606 = vmatpush1.msra.mxu0 0.0
    %1607 = vmatprep.subr.mxu0 0.0
    %1608 = vmatpush1.msra.mxu0 0.0
    %1609 = vmatprep.subr.mxu0 0.0
    %1610 = vmatpush1.msra.mxu0 0.0
    %1611 = vmatprep.subr.mxu0 0.0
    %1612 = vmatpush1.msra.mxu0 0.0
    %1613 = vmatprep.subr.mxu0 0.0
    %1614 = vmatpush1.msra.mxu0 0.0
    %1615 = vmatprep.subr.mxu0 0.0
    %1616 = vmatpush1.msra.mxu0 0.0
    %1617 = vmatprep.subr.mxu0 0.0
    %1618 = vmatpush1.msra.mxu0 0.0
    %1619 = vmatprep.subr.mxu0 0.0
    %1620 = vmatpush1.msra.mxu0 0.0
    %1621 = vmatprep.subr.mxu0 0.0
    %1622 = vmatpush1.msra.mxu0 0.0
    %1623 = vmatprep.subr.mxu0 0.0
    %1624 = vmatpush1.msra.mxu0 0.0
    %1625 = vmatprep.mubr.f32.mxu0 0.0
    %1626 = vmatmul.mubr.f32.gmra.mrb[0].mxu0 %v1460
    %v1627 = vpop.f32.mrb[0].mxu0
    %v1628 = vadd.f32 0.0, %v1627
    %v1629 = vpop.f32.mrb[0].mxu0
    %v1630 = vadd.f32 0.0, %v1629
    %1631 = vmatprep.mubr.f32.mxu0 0.0
    %1632 = vmatmul.mubr.f32.gmra.mrb[0].mxu0 %v1461
    %v1633 = vpop.f32.mrb[0].mxu0
    %v1634 = vadd.f32 0.0, %v1633
    %v1635 = vpop.f32.mrb[0].mxu0
    %v1636 = vadd.f32 0.0, %v1635
    %1637 = vmatprep.mubr.f32.mxu0 0.0
    %1638 = vmatmul.mubr.f32.gmra.mrb[0].mxu0 %v1462
    %v1639 = vpop.f32.mrb[0].mxu0
    %v1640 = vadd.f32 0.0, %v1639
    %v1641 = vpop.f32.mrb[0].mxu0
    %v1642 = vadd.f32 0.0, %v1641
    %1643 = vmatprep.mubr.f32.mxu0 0.0
    %1644 = vmatmul.mubr.f32.gmra.mrb[0].mxu0 %v1463
    %v1645 = vpop.f32.mrb[0].mxu0
    %v1646 = vadd.f32 0.0, %v1645
    %v1647 = vpop.f32.mrb[0].mxu0
    %v1648 = vadd.f32 0.0, %v1647
    %1649 = vmatprep.mubr.f32.mxu0 0.0
    %1650 = vmatmul.mubr.f32.gmra.mrb[0].mxu0 %v1464
    %v1651 = vpop.f32.mrb[0].mxu0
    %v1652 = vadd.f32 0.0, %v1651
    %v1653 = vpop.f32.mrb[0].mxu0
    %v1654 = vadd.f32 0.0, %v1653
    %1655 = vmatprep.mubr.f32.mxu0 0.0
    %1656 = vmatmul.mubr.f32.gmra.mrb[0].mxu0 %v1465
    %v1657 = vpop.f32.mrb[0].mxu0
    %v1658 = vadd.f32 0.0, %v1657
    %v1659 = vpop.f32.mrb[0].mxu0
    %v1660 = vadd.f32 0.0, %v1659
    %1661 = vmatprep.mubr.f32.mxu0 0.0
    %1662 = vmatmul.mubr.f32.gmra.mrb[0].mxu0 %v1466
    %v1663 = vpop.f32.mrb[0].mxu0
    %v1664 = vadd.f32 0.0, %v1663
    %v1665 = vpop.f32.mrb[0].mxu0
    %v1666 = vadd.f32 0.0, %v1665
    %1667 = vmatprep.mubr.f32.mxu0 0.0
    %1668 = vmatmul.mubr.f32.gmra.mrb[0].mxu0 %v1467
    %v1669 = vpop.f32.mrb[0].mxu0
    %v1670 = vadd.f32 0.0, %v1669
    %v1671 = vpop.f32.mrb[0].mxu0
    %v1672 = vadd.f32 0.0, %v1671
    %1673 = vdwg.mxu0
    %v1674 = vmul.f32 %v1628, 2.0
    %v1675 = vmul.f32 %v1630, 2.0
    %v1676 = vmul.f32 %v1634, 2.0
    %v1677 = vmul.f32 %v1636, 2.0
    %v1678 = vmul.f32 %v1640, 2.0
    %v1679 = vmul.f32 %v1642, 2.0
    %v1680 = vmul.f32 %v1646, 2.0
    %v1681 = vmul.f32 %v1648, 2.0
    %v1682 = vmul.f32 %v1652, 2.0
    %v1683 = vmul.f32 %v1654, 2.0
    %v1684 = vmul.f32 %v1658, 2.0
    %v1685 = vmul.f32 %v1660, 2.0
    %v1686 = vmul.f32 %v1664, 2.0
    %v1687 = vmul.f32 %v1666, 2.0
    %v1688 = vmul.f32 %v1670, 2.0
    %v1689 = vmul.f32 %v1672, 2.0
    %v1691 = vlaneseq
    %v1692 = vshrl.u32 %v1691, 7
    %v1693 = vsub.s32 0, %v1692
    %v1694 = vrot.slane %v1560, %v1693
    %v1695 = vlaneseq
    %v1696 = vshrl.u32 %v1695, 7
    %v1697 = vsub.s32 1, %v1696
    %v1698 = vrot.slane %v1560, %v1697
    %v1701 = vsub.f32 %v1694, %v1674
    %v1702 = vsub.f32 %v1698, %v1675
    %v1703 = vsub.f32 %v1694, %v1676
    %v1704 = vsub.f32 %v1698, %v1677
    %v1705 = vsub.f32 %v1694, %v1678
    %v1706 = vsub.f32 %v1698, %v1679
    %v1707 = vsub.f32 %v1694, %v1680
    %v1708 = vsub.f32 %v1698, %v1681
    %v1709 = vsub.f32 %v1694, %v1682
    %v1710 = vsub.f32 %v1698, %v1683
    %v1711 = vsub.f32 %v1694, %v1684
    %v1712 = vsub.f32 %v1698, %v1685
    %v1713 = vsub.f32 %v1694, %v1686
    %v1714 = vsub.f32 %v1698, %v1687
    %v1715 = vsub.f32 %v1694, %v1688
    %v1716 = vsub.f32 %v1698, %v1689
    %vm1717 = vcmp.le.f32.partialorder %v1701, %v1702
    %v1718 = vsel %vm1717, %v1701, %v1702
    %v1719 = vsel %vm1717, %v293, %v294
    %1720 = vmin.index.xlane.f32.xlu0 %v1718
    %v1721 = vpop.xlane.xlu0 %1720
    %1722 = vset.pattern.permute.xlu0 %v1721
    %1723 = vperm.xlu0 %1722, %v1719
    %v1724 = vpop.permute.xlu0 %1723
    %vm1725 = vcmp.le.f32.partialorder %v1703, %v1704
    %v1726 = vsel %vm1725, %v1703, %v1704
    %v1727 = vsel %vm1725, %v293, %v294
    %1728 = vmin.index.xlane.f32.xlu0 %v1726
    %v1729 = vpop.xlane.xlu0 %1728
    %1730 = vset.pattern.permute.xlu0 %v1729
    %1731 = vperm.xlu0 %1730, %v1727
    %v1732 = vpop.permute.xlu0 %1731
    %vm1733 = vcmp.le.f32.partialorder %v1705, %v1706
    %v1734 = vsel %vm1733, %v1705, %v1706
    %v1735 = vsel %vm1733, %v293, %v294
    %1736 = vmin.index.xlane.f32.xlu0 %v1734
    %v1737 = vpop.xlane.xlu0 %1736
    %1738 = vset.pattern.permute.xlu0 %v1737
    %1739 = vperm.xlu0 %1738, %v1735
    %v1740 = vpop.permute.xlu0 %1739
    %vm1741 = vcmp.le.f32.partialorder %v1707, %v1708
    %v1742 = vsel %vm1741, %v1707, %v1708
    %v1743 = vsel %vm1741, %v293, %v294
    %1744 = vmin.index.xlane.f32.xlu0 %v1742
    %v1745 = vpop.xlane.xlu0 %1744
    %1746 = vset.pattern.permute.xlu0 %v1745
    %1747 = vperm.xlu0 %1746, %v1743
    %v1748 = vpop.permute.xlu0 %1747
    %vm1749 = vcmp.le.f32.partialorder %v1709, %v1710
    %v1750 = vsel %vm1749, %v1709, %v1710
    %v1751 = vsel %vm1749, %v293, %v294
    %1752 = vmin.index.xlane.f32.xlu0 %v1750
    %v1753 = vpop.xlane.xlu0 %1752
    %1754 = vset.pattern.permute.xlu0 %v1753
    %1755 = vperm.xlu0 %1754, %v1751
    %v1756 = vpop.permute.xlu0 %1755
    %vm1757 = vcmp.le.f32.partialorder %v1711, %v1712
    %v1758 = vsel %vm1757, %v1711, %v1712
    %v1759 = vsel %vm1757, %v293, %v294
    %1760 = vmin.index.xlane.f32.xlu0 %v1758
    %v1761 = vpop.xlane.xlu0 %1760
    %1762 = vset.pattern.permute.xlu0 %v1761
    %1763 = vperm.xlu0 %1762, %v1759
    %v1764 = vpop.permute.xlu0 %1763
    %vm1765 = vcmp.le.f32.partialorder %v1713, %v1714
    %v1766 = vsel %vm1765, %v1713, %v1714
    %v1767 = vsel %vm1765, %v293, %v294
    %1768 = vmin.index.xlane.f32.xlu0 %v1766
    %v1769 = vpop.xlane.xlu0 %1768
    %1770 = vset.pattern.permute.xlu0 %v1769
    %1771 = vperm.xlu0 %1770, %v1767
    %v1772 = vpop.permute.xlu0 %1771
    %vm1773 = vcmp.le.f32.partialorder %v1715, %v1716
    %v1774 = vsel %vm1773, %v1715, %v1716
    %v1775 = vsel %vm1773, %v293, %v294
    %1776 = vmin.index.xlane.f32.xlu0 %v1774
    %v1777 = vpop.xlane.xlu0 %1776
    %1778 = vset.pattern.permute.xlu0 %v1777
    %1779 = vperm.xlu0 %1778, %v1775
    %v1780 = vpop.permute.xlu0 %1779
    %vm1781 = vcmp.eq.s32.totalorder %v1724, %v293
    %vm1782 = vcmp.eq.s32.totalorder %v1724, %v294
    %vm1783 = vcmp.eq.s32.totalorder %v1732, %v293
    %vm1784 = vcmp.eq.s32.totalorder %v1732, %v294
    %vm1785 = vcmp.eq.s32.totalorder %v1740, %v293
    %vm1786 = vcmp.eq.s32.totalorder %v1740, %v294
    %vm1787 = vcmp.eq.s32.totalorder %v1748, %v293
    %vm1788 = vcmp.eq.s32.totalorder %v1748, %v294
    %vm1789 = vcmp.eq.s32.totalorder %v1756, %v293
    %vm1790 = vcmp.eq.s32.totalorder %v1756, %v294
    %vm1791 = vcmp.eq.s32.totalorder %v1764, %v293
    %vm1792 = vcmp.eq.s32.totalorder %v1764, %v294
    %vm1793 = vcmp.eq.s32.totalorder %v1772, %v293
    %vm1794 = vcmp.eq.s32.totalorder %v1772, %v294
    %vm1795 = vcmp.eq.s32.totalorder %v1780, %v293
    %vm1796 = vcmp.eq.s32.totalorder %v1780, %v294
    %v1797 = vsel %vm1781, 1, 0
    %v1798 = vsel %vm1782, 1, 0
    %v1799 = vsel %vm1783, 1, 0
    %v1800 = vsel %vm1784, 1, 0
    %v1801 = vsel %vm1785, 1, 0
    %v1802 = vsel %vm1786, 1, 0
    %v1803 = vsel %vm1787, 1, 0
    %v1804 = vsel %vm1788, 1, 0
    %v1805 = vsel %vm1789, 1, 0
    %v1806 = vsel %vm1790, 1, 0
    %v1807 = vsel %vm1791, 1, 0
    %v1808 = vsel %vm1792, 1, 0
    %v1809 = vsel %vm1793, 1, 0
    %v1810 = vsel %vm1794, 1, 0
    %v1811 = vsel %vm1795, 1, 0
    %v1812 = vsel %vm1796, 1, 0
    %v1813 = vcvt.s32.f32 %v1797
    %v1814 = vcvt.s32.f32 %v1798
    %v1815 = vcvt.s32.f32 %v1799
    %v1816 = vcvt.s32.f32 %v1800
    %v1817 = vcvt.s32.f32 %v1801
    %v1818 = vcvt.s32.f32 %v1802
    %v1819 = vcvt.s32.f32 %v1803
    %v1820 = vcvt.s32.f32 %v1804
    %v1821 = vcvt.s32.f32 %v1805
    %v1822 = vcvt.s32.f32 %v1806
    %v1823 = vcvt.s32.f32 %v1807
    %v1824 = vcvt.s32.f32 %v1808
    %v1825 = vcvt.s32.f32 %v1809
    %v1826 = vcvt.s32.f32 %v1810
    %v1827 = vcvt.s32.f32 %v1811
    %v1828 = vcvt.s32.f32 %v1812
    %1829 = vmatprep.subr.mxu0 0.0
    %1830 = vmatpush1.msra.mxu0 %v1527
    %1831 = vmatprep.subr.mxu0 0.0
    %1832 = vmatpush1.msra.mxu0 %v1528
    %1833 = vmatprep.subr.mxu0 0.0
    %1834 = vmatpush1.msra.mxu0 %v1529
    %1835 = vmatprep.subr.mxu0 0.0
    %1836 = vmatpush1.msra.mxu0 %v1530
    %1837 = vmatprep.subr.mxu0 0.0
    %1838 = vmatpush1.msra.mxu0 %v1531
    %1839 = vmatprep.subr.mxu0 0.0
    %1840 = vmatpush1.msra.mxu0 %v1532
    %1841 = vmatprep.subr.mxu0 0.0
    %1842 = vmatpush1.msra.mxu0 %v1533
    %1843 = vmatprep.subr.mxu0 0.0
    %1844 = vmatpush1.msra.mxu0 %v1534
    %1845 = vmatprep.subr.mxu0 0.0
    %1846 = vmatpush1.msra.mxu0 %v1535
    %1847 = vmatprep.subr.mxu0 0.0
    %1848 = vmatpush1.msra.mxu0 %v1536
    %1849 = vmatprep.subr.mxu0 0.0
    %1850 = vmatpush1.msra.mxu0 %v1537
    %1851 = vmatprep.subr.mxu0 0.0
    %1852 = vmatpush1.msra.mxu0 %v1538
    %1853 = vmatprep.subr.mxu0 0.0
    %1854 = vmatpush1.msra.mxu0 %v1539
    %1855 = vmatprep.subr.mxu0 0.0
    %1856 = vmatpush1.msra.mxu0 %v1540
    %1857 = vmatprep.subr.mxu0 0.0
    %1858 = vmatpush1.msra.mxu0 %v1541
    %1859 = vmatprep.subr.mxu0 0.0
    %1860 = vmatpush1.msra.mxu0 %v1542
    %1861 = vmatprep.subr.mxu0 0.0
    %1862 = vmatpush1.msra.mxu0 %v1543
    %1863 = vmatprep.subr.mxu0 0.0
    %1864 = vmatpush1.msra.mxu0 %v1544
    %1865 = vmatprep.subr.mxu0 0.0
    %1866 = vmatpush1.msra.mxu0 %v1545
    %1867 = vmatprep.subr.mxu0 0.0
    %1868 = vmatpush1.msra.mxu0 %v1546
    %1869 = vmatprep.subr.mxu0 0.0
    %1870 = vmatpush1.msra.mxu0 %v1547
    %1871 = vmatprep.subr.mxu0 0.0
    %1872 = vmatpush1.msra.mxu0 %v1548
    %1873 = vmatprep.subr.mxu0 0.0
    %1874 = vmatpush1.msra.mxu0 %v1549
    %1875 = vmatprep.subr.mxu0 0.0
    %1876 = vmatpush1.msra.mxu0 %v1550
    %1877 = vmatprep.subr.mxu0 0.0
    %1878 = vmatpush1.msra.mxu0 %v1551
    %1879 = vmatprep.subr.mxu0 0.0
    %1880 = vmatpush1.msra.mxu0 %v1552
    %1881 = vmatprep.subr.mxu0 0.0
    %1882 = vmatpush1.msra.mxu0 %v1553
    %1883 = vmatprep.subr.mxu0 0.0
    %1884 = vmatpush1.msra.mxu0 %v1554
    %1885 = vmatprep.subr.mxu0 0.0
    %1886 = vmatpush1.msra.mxu0 %v1555
    %1887 = vmatprep.subr.mxu0 0.0
    %1888 = vmatpush1.msra.mxu0 %v1556
    %1889 = vmatprep.subr.mxu0 0.0
    %1890 = vmatpush1.msra.mxu0 %v1557
    %1891 = vmatprep.subr.mxu0 0.0
    %1892 = vmatpush1.msra.mxu0 %v1558
    %1893 = vmatprep.mubr.f32.mxu0 %v1814
    %1894 = vmatmul.mubr.f32.gmra.mrb[0].mxu0 %v1813
    %v1895 = vpop.f32.mrb[0].mxu0
    %v1896 = vadd.f32 0.0, %v1895
    %v1897 = vpop.f32.mrb[0].mxu0
    %1898 = vmatprep.mubr.f32.mxu0 %v1816
    %1899 = vmatmul.mubr.f32.gmra.mrb[0].mxu0 %v1815
    %v1900 = vpop.f32.mrb[0].mxu0
    %v1901 = vadd.f32 0.0, %v1900
    %v1902 = vpop.f32.mrb[0].mxu0
    %1903 = vmatprep.mubr.f32.mxu0 %v1818
    %1904 = vmatmul.mubr.f32.gmra.mrb[0].mxu0 %v1817
    %v1905 = vpop.f32.mrb[0].mxu0
    %v1906 = vadd.f32 0.0, %v1905
    %v1907 = vpop.f32.mrb[0].mxu0
    %1908 = vmatprep.mubr.f32.mxu0 %v1820
    %1909 = vmatmul.mubr.f32.gmra.mrb[0].mxu0 %v1819
    %v1910 = vpop.f32.mrb[0].mxu0
    %v1911 = vadd.f32 0.0, %v1910
    %v1912 = vpop.f32.mrb[0].mxu0
    %1913 = vmatprep.mubr.f32.mxu0 %v1822
    %1914 = vmatmul.mubr.f32.gmra.mrb[0].mxu0 %v1821
    %v1915 = vpop.f32.mrb[0].mxu0
    %v1916 = vadd.f32 0.0, %v1915
    %v1917 = vpop.f32.mrb[0].mxu0
    %1918 = vmatprep.mubr.f32.mxu0 %v1824
    %1919 = vmatmul.mubr.f32.gmra.mrb[0].mxu0 %v1823
    %v1920 = vpop.f32.mrb[0].mxu0
    %v1921 = vadd.f32 0.0, %v1920
    %v1922 = vpop.f32.mrb[0].mxu0
    %1923 = vmatprep.mubr.f32.mxu0 %v1826
    %1924 = vmatmul.mubr.f32.gmra.mrb[0].mxu0 %v1825
    %v1925 = vpop.f32.mrb[0].mxu0
    %v1926 = vadd.f32 0.0, %v1925
    %v1927 = vpop.f32.mrb[0].mxu0
    %1928 = vmatprep.mubr.f32.mxu0 %v1828
    %1929 = vmatmul.mubr.f32.gmra.mrb[0].mxu0 %v1827
    %v1930 = vpop.f32.mrb[0].mxu0
    %v1931 = vadd.f32 0.0, %v1930
    %v1932 = vpop.f32.mrb[0].mxu0
    %1933 = vdwg.mxu0
    %v1934 = vsub.f32 %v1460, %v1896
    %v1935 = vsub.f32 %v1461, %v1901
    %v1936 = vsub.f32 %v1462, %v1906
    %v1937 = vsub.f32 %v1463, %v1911
    %v1938 = vsub.f32 %v1464, %v1916
    %v1939 = vsub.f32 %v1465, %v1921
    %v1940 = vsub.f32 %v1466, %v1926
    %v1941 = vsub.f32 %v1467, %v1931
    %v1942 = vmul.f32 %v1934, %v1934
    %v1943 = vmul.f32 %v1935, %v1935
    %v1944 = vmul.f32 %v1936, %v1936
    %v1945 = vmul.f32 %v1937, %v1937
    %v1946 = vmul.f32 %v1938, %v1938
    %v1947 = vmul.f32 %v1939, %v1939
    %v1948 = vmul.f32 %v1940, %v1940
    %v1949 = vmul.f32 %v1941, %v1941
    %v1950 = vadd.f32 %v1942, %v1943
    %v1951 = vadd.f32 %v1950, %v1944
    %v1952 = vadd.f32 %v1951, %v1945
    %v1953 = vadd.f32 %v1952, %v1946
    %v1954 = vadd.f32 %v1953, %v1947
    %v1955 = vadd.f32 %v1954, %v1948
    %v1956 = vadd.f32 %v1955, %v1949
    %1957 = vadd.xlane.f32.xlu0 %v1956
    %v1958 = vpop.xlane.xlu0 %1957
    %v1959 = vrot.slane %v1958, 4
    %v1960 = vadd.f32 %v1958, %v1959
    %v1961 = vrot.slane %v1960, 2
    %v1962 = vadd.f32 %v1960, %v1961
    %v1963 = vrot.slane %v1962, 1
    %v1964 = vadd.f32 %v1962, %v1963
    %s1965 = vtos %v1964
    %v1966 = vstv %s1965
    %v1967 = vsub.f32 %v63, %v1934
    %v1968 = vsub.f32 %v64, %v1935
    %v1969 = vsub.f32 %v65, %v1936
    %v1970 = vsub.f32 %v66, %v1937
    %v1971 = vsub.f32 %v67, %v1938
    %v1972 = vsub.f32 %v68, %v1939
    %v1973 = vsub.f32 %v69, %v1940
    %v1974 = vsub.f32 %v70, %v1941
    %1975 = vst [vmem:[#allocation8] sm:$0xff] %v1967
    %1976 = vst [vmem:[#allocation8 + $0x8] sm:$0xff] %v1968
    %1977 = vst [vmem:[#allocation8 + $0x10] sm:$0xff] %v1969
    %1978 = vst [vmem:[#allocation8 + $0x18] sm:$0xff] %v1970
    %1979 = vst [vmem:[#allocation8 + $0x20] sm:$0xff] %v1971
    %1980 = vst [vmem:[#allocation8 + $0x28] sm:$0xff] %v1972
    %1981 = vst [vmem:[#allocation8 + $0x30] sm:$0xff] %v1973
    %1982 = vst [vmem:[#allocation8 + $0x38] sm:$0xff] %v1974
    %v1983 = vlaneseq
    %v1984 = vshrl.u32 %v1983, 7
    %v1985 = vsub.s32 %v293, %v1984
    %v1986 = vrot.slane %v302, %v1985
    %v1987 = vadd.s32 %v293, 4294967288
    %v1988 = vlaneseq
    %v1989 = vshrl.u32 %v1988, 7
    %v1990 = vsub.s32 %v1987, %v1989
    %v1991 = vrot.slane %v310, %v1990
    %vm1992 = vcmask 130112
    %v1993 = vsel %vm1992, %v1991, %v1986
    %v1994 = vadd.s32 %v293, 4294967280
    %v1995 = vlaneseq
    %v1996 = vshrl.u32 %v1995, 7
    %v1997 = vsub.s32 %v1994, %v1996
    %v1998 = vrot.slane %v318, %v1997
    %vm1999 = vcmask 195712
    %v2000 = vsel %vm1999, %v1998, %v1993
    %v2001 = vadd.s32 %v293, 4294967272
    %v2002 = vlaneseq
    %v2003 = vshrl.u32 %v2002, 7
    %v2004 = vsub.s32 %v2001, %v2003
    %v2005 = vrot.slane %v326, %v2004
    %vm2006 = vcmask 261312
    %v2007 = vsel %vm2006, %v2005, %v2000
    %v2008 = vadd.s32 %v293, 4294967264
    %v2009 = vlaneseq
    %v2010 = vshrl.u32 %v2009, 7
    %v2011 = vsub.s32 %v2008, %v2010
    %v2012 = vrot.slane %v334, %v2011
    %vm2013 = vcmask 326912
    %v2014 = vsel %vm2013, %v2012, %v2007
    %v2015 = vadd.s32 %v293, 4294967256
    %v2016 = vlaneseq
    %v2017 = vshrl.u32 %v2016, 7
    %v2018 = vsub.s32 %v2015, %v2017
    %v2019 = vrot.slane %v342, %v2018
    %vm2020 = vcmask 392512
    %v2021 = vsel %vm2020, %v2019, %v2014
    %v2022 = vadd.s32 %v293, 4294967248
    %v2023 = vlaneseq
    %v2024 = vshrl.u32 %v2023, 7
    %v2025 = vsub.s32 %v2022, %v2024
    %v2026 = vrot.slane %v350, %v2025
    %vm2027 = vcmask 458112
    %v2028 = vsel %vm2027, %v2026, %v2021
    %v2029 = vadd.s32 %v293, 4294967240
    %v2030 = vlaneseq
    %v2031 = vshrl.u32 %v2030, 7
    %v2032 = vsub.s32 %v2029, %v2031
    %v2033 = vrot.slane %v358, %v2032
    %vm2034 = vcmask 523712
    %v2035 = vsel %vm2034, %v2033, %v2028
    %v2036 = vlaneseq
    %v2037 = vshrl.u32 %v2036, 7
    %v2038 = vsub.s32 %v293, %v2037
    %v2039 = vrot.slane %v776, %v2038
    %v2040 = vlaneseq
    %v2041 = vshrl.u32 %v2040, 7
    %v2042 = vsub.s32 %v1987, %v2041
    %v2043 = vrot.slane %v784, %v2042
    %v2044 = vsel %vm1992, %v2043, %v2039
    %v2045 = vlaneseq
    %v2046 = vshrl.u32 %v2045, 7
    %v2047 = vsub.s32 %v1994, %v2046
    %v2048 = vrot.slane %v792, %v2047
    %v2049 = vsel %vm1999, %v2048, %v2044
    %v2050 = vlaneseq
    %v2051 = vshrl.u32 %v2050, 7
    %v2052 = vsub.s32 %v2001, %v2051
    %v2053 = vrot.slane %v800, %v2052
    %v2054 = vsel %vm2006, %v2053, %v2049
    %v2055 = vlaneseq
    %v2056 = vshrl.u32 %v2055, 7
    %v2057 = vsub.s32 %v2008, %v2056
    %v2058 = vrot.slane %v808, %v2057
    %v2059 = vsel %vm2013, %v2058, %v2054
    %v2060 = vlaneseq
    %v2061 = vshrl.u32 %v2060, 7
    %v2062 = vsub.s32 %v2015, %v2061
    %v2063 = vrot.slane %v816, %v2062
    %v2064 = vsel %vm2020, %v2063, %v2059
    %v2065 = vlaneseq
    %v2066 = vshrl.u32 %v2065, 7
    %v2067 = vsub.s32 %v2022, %v2066
    %v2068 = vrot.slane %v824, %v2067
    %v2069 = vsel %vm2027, %v2068, %v2064
    %v2070 = vlaneseq
    %v2071 = vshrl.u32 %v2070, 7
    %v2072 = vsub.s32 %v2029, %v2071
    %v2073 = vrot.slane %v832, %v2072
    %v2074 = vsel %vm2034, %v2073, %v2069
    %v2075 = vlaneseq
    %v2076 = vshrl.u32 %v2075, 7
    %v2077 = vsub.s32 %v293, %v2076
    %v2078 = vrot.slane %v1250, %v2077
    %v2079 = vlaneseq
    %v2080 = vshrl.u32 %v2079, 7
    %v2081 = vsub.s32 %v1987, %v2080
    %v2082 = vrot.slane %v1258, %v2081
    %v2083 = vsel %vm1992, %v2082, %v2078
    %v2084 = vlaneseq
    %v2085 = vshrl.u32 %v2084, 7
    %v2086 = vsub.s32 %v1994, %v2085
    %v2087 = vrot.slane %v1266, %v2086
    %v2088 = vsel %vm1999, %v2087, %v2083
    %v2089 = vlaneseq
    %v2090 = vshrl.u32 %v2089, 7
    %v2091 = vsub.s32 %v2001, %v2090
    %v2092 = vrot.slane %v1274, %v2091
    %v2093 = vsel %vm2006, %v2092, %v2088
    %v2094 = vlaneseq
    %v2095 = vshrl.u32 %v2094, 7
    %v2096 = vsub.s32 %v2008, %v2095
    %v2097 = vrot.slane %v1282, %v2096
    %v2098 = vsel %vm2013, %v2097, %v2093
    %v2099 = vlaneseq
    %v2100 = vshrl.u32 %v2099, 7
    %v2101 = vsub.s32 %v2015, %v2100
    %v2102 = vrot.slane %v1290, %v2101
    %v2103 = vsel %vm2020, %v2102, %v2098
    %v2104 = vlaneseq
    %v2105 = vshrl.u32 %v2104, 7
    %v2106 = vsub.s32 %v2022, %v2105
    %v2107 = vrot.slane %v1298, %v2106
    %v2108 = vsel %vm2027, %v2107, %v2103
    %v2109 = vlaneseq
    %v2110 = vshrl.u32 %v2109, 7
    %v2111 = vsub.s32 %v2029, %v2110
    %v2112 = vrot.slane %v1306, %v2111
    %v2113 = vsel %vm2034, %v2112, %v2108
    %v2114 = vlaneseq
    %v2115 = vshrl.u32 %v2114, 7
    %v2116 = vsub.s32 %v293, %v2115
    %v2117 = vrot.slane %v1724, %v2116
    %v2118 = vlaneseq
    %v2119 = vshrl.u32 %v2118, 7
    %v2120 = vsub.s32 %v1987, %v2119
    %v2121 = vrot.slane %v1732, %v2120
    %v2122 = vsel %vm1992, %v2121, %v2117
    %v2123 = vlaneseq
    %v2124 = vshrl.u32 %v2123, 7
    %v2125 = vsub.s32 %v1994, %v2124
    %v2126 = vrot.slane %v1740, %v2125
    %v2127 = vsel %vm1999, %v2126, %v2122
    %v2128 = vlaneseq
    %v2129 = vshrl.u32 %v2128, 7
    %v2130 = vsub.s32 %v2001, %v2129
    %v2131 = vrot.slane %v1748, %v2130
    %v2132 = vsel %vm2006, %v2131, %v2127
    %v2133 = vlaneseq
    %v2134 = vshrl.u32 %v2133, 7
    %v2135 = vsub.s32 %v2008, %v2134
    %v2136 = vrot.slane %v1756, %v2135
    %v2137 = vsel %vm2013, %v2136, %v2132
    %v2138 = vlaneseq
    %v2139 = vshrl.u32 %v2138, 7
    %v2140 = vsub.s32 %v2015, %v2139
    %v2141 = vrot.slane %v1764, %v2140
    %v2142 = vsel %vm2020, %v2141, %v2137
    %v2143 = vlaneseq
    %v2144 = vshrl.u32 %v2143, 7
    %v2145 = vsub.s32 %v2022, %v2144
    %v2146 = vrot.slane %v1772, %v2145
    %v2147 = vsel %vm2027, %v2146, %v2142
    %v2148 = vlaneseq
    %v2149 = vshrl.u32 %v2148, 7
    %v2150 = vsub.s32 %v2029, %v2149
    %v2151 = vrot.slane %v1780, %v2150
    %v2152 = vsel %vm2034, %v2151, %v2147
    %vm2153 = vcmask 1040384
    %v2154 = vsel %vm2153, %v2035, %v2074
    %vm2155 = vcmask 1041408
    %v2156 = vsel %vm2155, %v2154, %v2113
    %vm2157 = vcmask 1042432
    %v2158 = vsel %vm2157, %v2156, %v2152
    %vm2159 = vcmask 519168
    %2160 = vst.msk [vmem:[#allocation9] sm:$0xf] %vm2159, %v2158
    %vm2161 = vcmask 7168
    %v2162 = vsel %vm2161, %v544, %v1018
    %vm2163 = vcmask 15360
    %v2164 = vsel %vm2163, %v2162, %v1492
    %vm2165 = vcmask 23552
    %v2166 = vsel %vm2165, %v2164, %v1966
    %v2167 = vmul.f32 %v2166, 0.00024414063
    %v2168 = vlaneseq
    %v2169 = vshrl.u32 %v2168, 7
    %vm2170 = vcmp.eq.s32.totalorder %v2169, 0
    %v2171 = vlaneseq
    %v2172 = vshrl.u32 %v2171, 7
    %v2173 = vsub.s32 0, %v2172
    %v2174 = vrot.slane %v2167, %v2173
    %v2175 = vsel %vm2170, %v2174, 0.0
    %vm2176 = vcmask 31744
    %2177 = vst.msk [vmem:[%s6] sm:$0xff] %vm2176, %v2175
    // Predicated region
    $region30: #{tpu_custom_call.1} parent=1 // pred_check
      _
    $region31: #{tpu_custom_call.1} parent=1 // pred_check_branch
      %2179 = sbr.rel (0) target = $region33
    $region32: #{tpu_custom_call.1} parent=1 // pred_region
      %s2181 = ssub.s32 1024, 1024
      %2182 = vsyncadd [#allocation4], %s2181
      %s2183 = sshll.u32 [#allocation8], 4
      %s2184 = int_to_ptr.vmem [resolvable:$true] %s2183
      %2189 = dma.vmem_to_hbm [thread:$0]  %s2184, 1024, %s4, [#allocation4], 128, 128, 8
    $region33: #{tpu_custom_call.1} parent=1 // pred_fallthru
      _
    // Predicated region
    $region34: #{tpu_custom_call.1} parent=1 // pred_check
      _
    $region35: #{tpu_custom_call.1} parent=1 // pred_check_branch
      %2191 = sbr.rel (0) target = $region37
    $region36: #{tpu_custom_call.1} parent=1 // pred_region
      %s2193 = ssub.s32 64, 64
      %2194 = vsyncadd [#allocation10], %s2193
      %s2196 = sshll.u32 [#allocation9], 4
      %s2197 = int_to_ptr.vmem [resolvable:$true] %s2196
      %2199 = dma.vmem_to_hbm [thread:$0]  %s2197, 64, %s5, [#allocation10]
    $region37: #{tpu_custom_call.1} parent=1 // pred_fallthru
      _
    // Predicated region
    $region38: #{tpu_custom_call.1} parent=1 // pred_check
      _
    $region39: #{tpu_custom_call.1} parent=1 // pred_check_branch
      %2201 = sbr.rel (0) target = $region41
    $region40: #{tpu_custom_call.1} parent=1 // pred_region
      _
    $region41: #{tpu_custom_call.1} parent=1 // pred_fallthru
      _
    // Predicated region
    $region42: #{tpu_custom_call.1} parent=1 // pred_check
      _
    $region43: #{tpu_custom_call.1} parent=1 // pred_check_branch
      %2203 = sbr.rel (0) target = $region45
    $region44: #{tpu_custom_call.1} parent=1 // pred_region
      %2204 = dma.done [#allocation4], 1024
    $region45: #{tpu_custom_call.1} parent=1 // pred_fallthru
      _
    // Predicated region
    $region46: #{tpu_custom_call.1} parent=1 // pred_check
      _
    $region47: #{tpu_custom_call.1} parent=1 // pred_check_branch
      %2206 = sbr.rel (0) target = $region49
    $region48: #{tpu_custom_call.1} parent=1 // pred_region
      %2207 = dma.done [#allocation10], 64
    $region49: #{tpu_custom_call.1} parent=1 // pred_fallthru
      _
    // Predicated region
    $region50: #{tpu_custom_call.1} parent=1 // pred_check
      _
    $region51: #{tpu_custom_call.1} parent=1 // pred_check_branch
      %2209 = sbr.rel (0) target = $region53
    $region52: #{tpu_custom_call.1} parent=1 // pred_region
      _
    $region53: #{tpu_custom_call.1} parent=1 // pred_fallthru
      _
    %2210 = vsyncpa [#allocation3], 1
    %2211 = vsyncpa [#allocation6], 1
    %2212 = vsyncpa [#allocation4], 1
    %2213 = vsyncpa [#allocation10], 1

</llo_original>
